<compile_context>
chip_gen: v7x
topology: tpu7x:2x2x1
jax: 0.10.0
libtpu: 0.0.40
codegen_flags: <defaults>
</compile_context>

<pallas_src>
import math

import jax
import jax.numpy as jnp
from jax.experimental import pallas as pl
from jax.experimental.pallas import tpu as pltpu


# ----------------------------- fused kernel -------------------------------- #

def make_fused_lstm_kernel(T, B, D, H, num_layers):
    """Builds the fused kernel body for fixed (T, B, D, H, num_layers).

    Ref layout (all whole-array VMEM refs, no grid):
      x_ref:           (T*B, D)   time-major-flattened input (row t*B + b)
      per layer l:     w_ih^T (d_in, 4H), w_hh^T (H, 4H), bias (1, 4H)
      w_fc_ref:        (H, 1)
      b_fc_ref:        (1, 1)
      out_ref:         (B, 1)
    """

    def kernel(*refs):
        x_ref = refs[0]
        layer_refs = refs[1:1 + 3 * num_layers]
        w_fc_ref = refs[1 + 3 * num_layers]
        b_fc_ref = refs[2 + 3 * num_layers]
        out_ref = refs[3 + 3 * num_layers]

        inp = x_ref[...]                                   # (T*B, d_in)
        h_last = None
        for layer in range(num_layers):
            w_ih = layer_refs[3 * layer][...]              # (d_in, 4H)
            w_hh = layer_refs[3 * layer + 1][...]          # (H, 4H)
            bias = layer_refs[3 * layer + 2][...]          # (1, 4H)

            # Hoisted input projection: one big matmul for all timesteps;
            # bias folded in here so it is not re-added inside the recurrence.
            gates_x = jnp.dot(inp, w_ih,
                              preferred_element_type=jnp.float32) + bias  # (T*B, 4H)

            h = jnp.zeros((B, H), jnp.float32)
            c = jnp.zeros((B, H), jnp.float32)
            h_steps = []
            for t in range(T):                             # static unroll, T small
                # Only the recurrent matmul stays on the serial path.
                gates = gates_x[t * B:(t + 1) * B, :] + jnp.dot(
                    h, w_hh, preferred_element_type=jnp.float32)          # (B, 4H)

                # One EUP pass over the full 128-lane gate vector for the
                # sigmoid gates; tanh only on the g slice.
                sig = jax.nn.sigmoid(gates)
                i_g = sig[:, 0 * H:1 * H]
                f_g = sig[:, 1 * H:2 * H]
                o_g = sig[:, 3 * H:4 * H]
                g_g = jnp.tanh(gates[:, 2 * H:3 * H])

                c = f_g * c + i_g * g_g
                h = o_g * jnp.tanh(c)

                if layer < num_layers - 1:
                    h_steps.append(h)

            h_last = h
            if layer < num_layers - 1:
                # Next layer's input sequence, kept in registers/VMEM values
                # (sublane-axis concat; no scratch store/reload round trip).
                inp = jnp.concatenate(h_steps, axis=0)     # (T*B, H)

        # Final Linear(hidden -> 1) fused in; written once at the end.
        out_ref[...] = (jnp.dot(h_last, w_fc_ref[...],
                                preferred_element_type=jnp.float32)
                        + b_fc_ref[...])                   # (B, 1)

    return kernel


# ----------------------------- wrappers ------------------------------------ #

def lstm_forward(x, lstm_params, fc_params):
    """x: (B, T, input_size), batch_first like the PyTorch module. Returns (B, 1)."""
    B, T, D = x.shape
    H = lstm_params[0]["w_hh_t"].shape[0]
    num_layers = len(lstm_params)

    # Pad batch to a full sublane (>= 8) so every vreg row / MXU row is used.
    B_pad = max(8, ((B + 7) // 8) * 8)
    x_p = jnp.zeros((B_pad, T, D), jnp.float32).at[:B].set(x.astype(jnp.float32))
    # Time-major flattening: row index = t * B_pad + b.
    x_flat = jnp.transpose(x_p, (1, 0, 2)).reshape(T * B_pad, D)

    weight_args = []
    for p in lstm_params:
        weight_args += [p["w_ih_t"], p["w_hh_t"], p["bias"]]

    n_inputs = 1 + len(weight_args) + 2
    kernel = make_fused_lstm_kernel(T, B_pad, D, H, num_layers)

    out_pad = pl.pallas_call(
        kernel,
        out_shape=jax.ShapeDtypeStruct((B_pad, 1), jnp.float32),
        in_specs=[pl.BlockSpec(memory_space=pltpu.MemorySpace.VMEM)] * n_inputs,
        out_specs=pl.BlockSpec(memory_space=pltpu.MemorySpace.VMEM),
    )(x_flat, *weight_args, fc_params["w_t"], fc_params["b"])

    return out_pad[:B]


def init_params(key, input_size, hidden_size, num_layers):
    """PyTorch-style uniform(-1/sqrt(H), 1/sqrt(H)) init, deterministic."""
    params = []
    k = 1.0 / math.sqrt(hidden_size)
    for layer in range(num_layers):
        d_in = input_size if layer == 0 else hidden_size
        key, k1, k2, k3, k4 = jax.random.split(key, 5)
        w_ih = jax.random.uniform(k1, (4 * hidden_size, d_in), jnp.float32, -k, k)
        w_hh = jax.random.uniform(k2, (4 * hidden_size, hidden_size), jnp.float32, -k, k)
        b_ih = jax.random.uniform(k3, (4 * hidden_size,), jnp.float32, -k, k)
        b_hh = jax.random.uniform(k4, (4 * hidden_size,), jnp.float32, -k, k)
        params.append({
            "w_ih_t": jnp.transpose(w_ih),                       # (d_in, 4H)
            "w_hh_t": jnp.transpose(w_hh),                       # (H, 4H)
            "bias": (b_ih + b_hh).reshape(1, 4 * hidden_size),   # (1, 4H)
        })
    key, kf1, kf2 = jax.random.split(key, 3)
    w_fc = jax.random.uniform(kf1, (1, hidden_size), jnp.float32, -k, k)
    b_fc = jax.random.uniform(kf2, (1,), jnp.float32, -k, k)
    fc = {"w_t": jnp.transpose(w_fc), "b": b_fc.reshape(1, 1)}
    return params, fc


def lstm_reference(x, lstm_params, fc_params):
    """Pure-JAX reference of the PyTorch forward, for correctness checking."""
    B, T, _ = x.shape
    H = lstm_params[0]["w_hh_t"].shape[0]
    inp = x.astype(jnp.float32)
    for p in lstm_params:
        h = jnp.zeros((B, H), jnp.float32)
        c = jnp.zeros((B, H), jnp.float32)
        outs = []
        for t in range(T):
            gates = inp[:, t, :] @ p["w_ih_t"] + h @ p["w_hh_t"] + p["bias"]
            i = jax.nn.sigmoid(gates[:, 0 * H:1 * H])
            f = jax.nn.sigmoid(gates[:, 1 * H:2 * H])
            g = jnp.tanh(gates[:, 2 * H:3 * H])
            o = jax.nn.sigmoid(gates[:, 3 * H:4 * H])
            c = f * c + i * g
            h = o * jnp.tanh(c)
            outs.append(h)
        inp = jnp.stack(outs, axis=1)                            # (B, T, H)
    return inp[:, -1, :] @ fc_params["w_t"] + fc_params["b"]


# ------------------------------- main -------------------------------------- #

if __name__ == "__main__":
    input_size = 4
    hidden_size = 32
    num_stacked_layers = 2
    batch = 2
    seq_len = 8

    key = jax.random.PRNGKey(0)
    key, kx, kp = jax.random.split(key, 3)
    x = jax.random.normal(kx, (batch, seq_len, input_size), jnp.float32)

    lstm_params, fc_params = init_params(kp, input_size, hidden_size,
                                         num_stacked_layers)

    out = lstm_forward(x, lstm_params, fc_params)
    out = jax.block_until_ready(out)
    assert out.shape == (batch, 1) and out.dtype == jnp.float32

    ref = jax.block_until_ready(lstm_reference(x, lstm_params, fc_params))
    max_diff = float(jnp.max(jnp.abs(out - ref)))
    assert max_diff < 5e-2, f"kernel/reference mismatch: max abs diff {max_diff}"

    print("KERNEL_OK")
</pallas_src>

<mosaic_0001>
module attributes {stable_mosaic.version = 11 : i64} {
  func.func @kernel(%arg0: memref<64x4xf32, #tpu.memory_space<vmem>>, %arg1: memref<4x128xf32, #tpu.memory_space<vmem>>, %arg2: memref<32x128xf32, #tpu.memory_space<vmem>>, %arg3: memref<1x128xf32, #tpu.memory_space<vmem>>, %arg4: memref<32x128xf32, #tpu.memory_space<vmem>>, %arg5: memref<32x128xf32, #tpu.memory_space<vmem>>, %arg6: memref<1x128xf32, #tpu.memory_space<vmem>>, %arg7: memref<32x1xf32, #tpu.memory_space<vmem>>, %arg8: memref<1x1xf32, #tpu.memory_space<vmem>>, %arg9: memref<8x1xf32, #tpu.memory_space<vmem>>) attributes {dimension_semantics = [], scalar_prefetch = 0 : i64, scratch_operands = 0 : i64, tpu.core_type = #tpu.core_type<tc>} {
    %c0 = arith.constant 0 : index
    %c0_0 = arith.constant 0 : index
    %0 = vector.load %arg0[%c0, %c0_0] : memref<64x4xf32, #tpu.memory_space<vmem>>, vector<64x4xf32>
    %c0_1 = arith.constant 0 : index
    %c0_2 = arith.constant 0 : index
    %1 = vector.load %arg1[%c0_1, %c0_2] : memref<4x128xf32, #tpu.memory_space<vmem>>, vector<4x128xf32>
    %c0_3 = arith.constant 0 : index
    %c0_4 = arith.constant 0 : index
    %2 = vector.load %arg2[%c0_3, %c0_4] : memref<32x128xf32, #tpu.memory_space<vmem>>, vector<32x128xf32>
    %c0_5 = arith.constant 0 : index
    %c0_6 = arith.constant 0 : index
    %3 = vector.load %arg3[%c0_5, %c0_6] : memref<1x128xf32, #tpu.memory_space<vmem>>, vector<1x128xf32>
    %cst = arith.constant dense<0.000000e+00> : vector<64x128xf32>
    %4 = tpu.matmul %0, %1, %cst {dimension_numbers = #tpu.dot_dimension_numbers<[1], [0], [0], [1], [0, 0, 1, 1], [], []>} : vector<64x4xf32>, vector<4x128xf32>, vector<64x128xf32> -> vector<64x128xf32>
    %5 = vector.broadcast %3 : vector<1x128xf32> to vector<64x128xf32>
    %6 = arith.addf %4, %5 : vector<64x128xf32>
    %cst_7 = arith.constant 0.000000e+00 : f32
    %7 = vector.broadcast %cst_7 : f32 to vector<8x32xf32>
    %cst_8 = arith.constant 0.000000e+00 : f32
    %8 = vector.broadcast %cst_8 : f32 to vector<8x32xf32>
    %9 = vector.extract_strided_slice %6 {offsets = [0, 0], sizes = [8, 128], strides = [1, 1]} : vector<64x128xf32> to vector<8x128xf32>
    %cst_9 = arith.constant dense<0.000000e+00> : vector<8x128xf32>
    %10 = tpu.matmul %7, %2, %cst_9 {dimension_numbers = #tpu.dot_dimension_numbers<[1], [0], [0], [1], [0, 0, 1, 1], [], []>} : vector<8x32xf32>, vector<32x128xf32>, vector<8x128xf32> -> vector<8x128xf32>
    %11 = arith.addf %9, %10 : vector<8x128xf32>
    %12 = arith.negf %11 : vector<8x128xf32>
    %13 = math.exp %12 : vector<8x128xf32>
    %cst_10 = arith.constant 1.000000e+00 : f32
    %14 = vector.broadcast %cst_10 : f32 to vector<8x128xf32>
    %15 = arith.addf %14, %13 : vector<8x128xf32>
    %16 = arith.divf %14, %15 : vector<8x128xf32>
    %17 = vector.extract_strided_slice %16 {offsets = [0, 0], sizes = [8, 32], strides = [1, 1]} : vector<8x128xf32> to vector<8x32xf32>
    %18 = vector.extract_strided_slice %16 {offsets = [0, 32], sizes = [8, 32], strides = [1, 1]} : vector<8x128xf32> to vector<8x32xf32>
    %19 = vector.extract_strided_slice %16 {offsets = [0, 96], sizes = [8, 32], strides = [1, 1]} : vector<8x128xf32> to vector<8x32xf32>
    %20 = vector.extract_strided_slice %11 {offsets = [0, 64], sizes = [8, 32], strides = [1, 1]} : vector<8x128xf32> to vector<8x32xf32>
    %21 = math.tanh %20 : vector<8x32xf32>
    %22 = arith.mulf %18, %8 : vector<8x32xf32>
    %23 = arith.mulf %17, %21 : vector<8x32xf32>
    %24 = arith.addf %22, %23 : vector<8x32xf32>
    %25 = math.tanh %24 : vector<8x32xf32>
    %26 = arith.mulf %19, %25 : vector<8x32xf32>
    %27 = vector.extract_strided_slice %6 {offsets = [8, 0], sizes = [8, 128], strides = [1, 1]} : vector<64x128xf32> to vector<8x128xf32>
    %cst_11 = arith.constant dense<0.000000e+00> : vector<8x128xf32>
    %28 = tpu.matmul %26, %2, %cst_11 {dimension_numbers = #tpu.dot_dimension_numbers<[1], [0], [0], [1], [0, 0, 1, 1], [], []>} : vector<8x32xf32>, vector<32x128xf32>, vector<8x128xf32> -> vector<8x128xf32>
    %29 = arith.addf %27, %28 : vector<8x128xf32>
    %30 = arith.negf %29 : vector<8x128xf32>
    %31 = math.exp %30 : vector<8x128xf32>
    %cst_12 = arith.constant 1.000000e+00 : f32
    %32 = vector.broadcast %cst_12 : f32 to vector<8x128xf32>
    %33 = arith.addf %32, %31 : vector<8x128xf32>
    %34 = arith.divf %32, %33 : vector<8x128xf32>
    %35 = vector.extract_strided_slice %34 {offsets = [0, 0], sizes = [8, 32], strides = [1, 1]} : vector<8x128xf32> to vector<8x32xf32>
    %36 = vector.extract_strided_slice %34 {offsets = [0, 32], sizes = [8, 32], strides = [1, 1]} : vector<8x128xf32> to vector<8x32xf32>
    %37 = vector.extract_strided_slice %34 {offsets = [0, 96], sizes = [8, 32], strides = [1, 1]} : vector<8x128xf32> to vector<8x32xf32>
    %38 = vector.extract_strided_slice %29 {offsets = [0, 64], sizes = [8, 32], strides = [1, 1]} : vector<8x128xf32> to vector<8x32xf32>
    %39 = math.tanh %38 : vector<8x32xf32>
    %40 = arith.mulf %36, %24 : vector<8x32xf32>
    %41 = arith.mulf %35, %39 : vector<8x32xf32>
    %42 = arith.addf %40, %41 : vector<8x32xf32>
    %43 = math.tanh %42 : vector<8x32xf32>
    %44 = arith.mulf %37, %43 : vector<8x32xf32>
    %45 = vector.extract_strided_slice %6 {offsets = [16, 0], sizes = [8, 128], strides = [1, 1]} : vector<64x128xf32> to vector<8x128xf32>
    %cst_13 = arith.constant dense<0.000000e+00> : vector<8x128xf32>
    %46 = tpu.matmul %44, %2, %cst_13 {dimension_numbers = #tpu.dot_dimension_numbers<[1], [0], [0], [1], [0, 0, 1, 1], [], []>} : vector<8x32xf32>, vector<32x128xf32>, vector<8x128xf32> -> vector<8x128xf32>
    %47 = arith.addf %45, %46 : vector<8x128xf32>
    %48 = arith.negf %47 : vector<8x128xf32>
    %49 = math.exp %48 : vector<8x128xf32>
    %cst_14 = arith.constant 1.000000e+00 : f32
    %50 = vector.broadcast %cst_14 : f32 to vector<8x128xf32>
    %51 = arith.addf %50, %49 : vector<8x128xf32>
    %52 = arith.divf %50, %51 : vector<8x128xf32>
    %53 = vector.extract_strided_slice %52 {offsets = [0, 0], sizes = [8, 32], strides = [1, 1]} : vector<8x128xf32> to vector<8x32xf32>
    %54 = vector.extract_strided_slice %52 {offsets = [0, 32], sizes = [8, 32], strides = [1, 1]} : vector<8x128xf32> to vector<8x32xf32>
    %55 = vector.extract_strided_slice %52 {offsets = [0, 96], sizes = [8, 32], strides = [1, 1]} : vector<8x128xf32> to vector<8x32xf32>
    %56 = vector.extract_strided_slice %47 {offsets = [0, 64], sizes = [8, 32], strides = [1, 1]} : vector<8x128xf32> to vector<8x32xf32>
    %57 = math.tanh %56 : vector<8x32xf32>
    %58 = arith.mulf %54, %42 : vector<8x32xf32>
    %59 = arith.mulf %53, %57 : vector<8x32xf32>
    %60 = arith.addf %58, %59 : vector<8x32xf32>
    %61 = math.tanh %60 : vector<8x32xf32>
    %62 = arith.mulf %55, %61 : vector<8x32xf32>
    %63 = vector.extract_strided_slice %6 {offsets = [24, 0], sizes = [8, 128], strides = [1, 1]} : vector<64x128xf32> to vector<8x128xf32>
    %cst_15 = arith.constant dense<0.000000e+00> : vector<8x128xf32>
    %64 = tpu.matmul %62, %2, %cst_15 {dimension_numbers = #tpu.dot_dimension_numbers<[1], [0], [0], [1], [0, 0, 1, 1], [], []>} : vector<8x32xf32>, vector<32x128xf32>, vector<8x128xf32> -> vector<8x128xf32>
    %65 = arith.addf %63, %64 : vector<8x128xf32>
    %66 = arith.negf %65 : vector<8x128xf32>
    %67 = math.exp %66 : vector<8x128xf32>
    %cst_16 = arith.constant 1.000000e+00 : f32
    %68 = vector.broadcast %cst_16 : f32 to vector<8x128xf32>
    %69 = arith.addf %68, %67 : vector<8x128xf32>
    %70 = arith.divf %68, %69 : vector<8x128xf32>
    %71 = vector.extract_strided_slice %70 {offsets = [0, 0], sizes = [8, 32], strides = [1, 1]} : vector<8x128xf32> to vector<8x32xf32>
    %72 = vector.extract_strided_slice %70 {offsets = [0, 32], sizes = [8, 32], strides = [1, 1]} : vector<8x128xf32> to vector<8x32xf32>
    %73 = vector.extract_strided_slice %70 {offsets = [0, 96], sizes = [8, 32], strides = [1, 1]} : vector<8x128xf32> to vector<8x32xf32>
    %74 = vector.extract_strided_slice %65 {offsets = [0, 64], sizes = [8, 32], strides = [1, 1]} : vector<8x128xf32> to vector<8x32xf32>
    %75 = math.tanh %74 : vector<8x32xf32>
    %76 = arith.mulf %72, %60 : vector<8x32xf32>
    %77 = arith.mulf %71, %75 : vector<8x32xf32>
    %78 = arith.addf %76, %77 : vector<8x32xf32>
    %79 = math.tanh %78 : vector<8x32xf32>
    %80 = arith.mulf %73, %79 : vector<8x32xf32>
    %81 = vector.extract_strided_slice %6 {offsets = [32, 0], sizes = [8, 128], strides = [1, 1]} : vector<64x128xf32> to vector<8x128xf32>
    %cst_17 = arith.constant dense<0.000000e+00> : vector<8x128xf32>
    %82 = tpu.matmul %80, %2, %cst_17 {dimension_numbers = #tpu.dot_dimension_numbers<[1], [0], [0], [1], [0, 0, 1, 1], [], []>} : vector<8x32xf32>, vector<32x128xf32>, vector<8x128xf32> -> vector<8x128xf32>
    %83 = arith.addf %81, %82 : vector<8x128xf32>
    %84 = arith.negf %83 : vector<8x128xf32>
    %85 = math.exp %84 : vector<8x128xf32>
    %cst_18 = arith.constant 1.000000e+00 : f32
    %86 = vector.broadcast %cst_18 : f32 to vector<8x128xf32>
    %87 = arith.addf %86, %85 : vector<8x128xf32>
    %88 = arith.divf %86, %87 : vector<8x128xf32>
    %89 = vector.extract_strided_slice %88 {offsets = [0, 0], sizes = [8, 32], strides = [1, 1]} : vector<8x128xf32> to vector<8x32xf32>
    %90 = vector.extract_strided_slice %88 {offsets = [0, 32], sizes = [8, 32], strides = [1, 1]} : vector<8x128xf32> to vector<8x32xf32>
    %91 = vector.extract_strided_slice %88 {offsets = [0, 96], sizes = [8, 32], strides = [1, 1]} : vector<8x128xf32> to vector<8x32xf32>
    %92 = vector.extract_strided_slice %83 {offsets = [0, 64], sizes = [8, 32], strides = [1, 1]} : vector<8x128xf32> to vector<8x32xf32>
    %93 = math.tanh %92 : vector<8x32xf32>
    %94 = arith.mulf %90, %78 : vector<8x32xf32>
    %95 = arith.mulf %89, %93 : vector<8x32xf32>
    %96 = arith.addf %94, %95 : vector<8x32xf32>
    %97 = math.tanh %96 : vector<8x32xf32>
    %98 = arith.mulf %91, %97 : vector<8x32xf32>
    %99 = vector.extract_strided_slice %6 {offsets = [40, 0], sizes = [8, 128], strides = [1, 1]} : vector<64x128xf32> to vector<8x128xf32>
    %cst_19 = arith.constant dense<0.000000e+00> : vector<8x128xf32>
    %100 = tpu.matmul %98, %2, %cst_19 {dimension_numbers = #tpu.dot_dimension_numbers<[1], [0], [0], [1], [0, 0, 1, 1], [], []>} : vector<8x32xf32>, vector<32x128xf32>, vector<8x128xf32> -> vector<8x128xf32>
    %101 = arith.addf %99, %100 : vector<8x128xf32>
    %102 = arith.negf %101 : vector<8x128xf32>
    %103 = math.exp %102 : vector<8x128xf32>
    %cst_20 = arith.constant 1.000000e+00 : f32
    %104 = vector.broadcast %cst_20 : f32 to vector<8x128xf32>
    %105 = arith.addf %104, %103 : vector<8x128xf32>
    %106 = arith.divf %104, %105 : vector<8x128xf32>
    %107 = vector.extract_strided_slice %106 {offsets = [0, 0], sizes = [8, 32], strides = [1, 1]} : vector<8x128xf32> to vector<8x32xf32>
    %108 = vector.extract_strided_slice %106 {offsets = [0, 32], sizes = [8, 32], strides = [1, 1]} : vector<8x128xf32> to vector<8x32xf32>
    %109 = vector.extract_strided_slice %106 {offsets = [0, 96], sizes = [8, 32], strides = [1, 1]} : vector<8x128xf32> to vector<8x32xf32>
    %110 = vector.extract_strided_slice %101 {offsets = [0, 64], sizes = [8, 32], strides = [1, 1]} : vector<8x128xf32> to vector<8x32xf32>
    %111 = math.tanh %110 : vector<8x32xf32>
    %112 = arith.mulf %108, %96 : vector<8x32xf32>
    %113 = arith.mulf %107, %111 : vector<8x32xf32>
    %114 = arith.addf %112, %113 : vector<8x32xf32>
    %115 = math.tanh %114 : vector<8x32xf32>
    %116 = arith.mulf %109, %115 : vector<8x32xf32>
    %117 = vector.extract_strided_slice %6 {offsets = [48, 0], sizes = [8, 128], strides = [1, 1]} : vector<64x128xf32> to vector<8x128xf32>
    %cst_21 = arith.constant dense<0.000000e+00> : vector<8x128xf32>
    %118 = tpu.matmul %116, %2, %cst_21 {dimension_numbers = #tpu.dot_dimension_numbers<[1], [0], [0], [1], [0, 0, 1, 1], [], []>} : vector<8x32xf32>, vector<32x128xf32>, vector<8x128xf32> -> vector<8x128xf32>
    %119 = arith.addf %117, %118 : vector<8x128xf32>
    %120 = arith.negf %119 : vector<8x128xf32>
    %121 = math.exp %120 : vector<8x128xf32>
    %cst_22 = arith.constant 1.000000e+00 : f32
    %122 = vector.broadcast %cst_22 : f32 to vector<8x128xf32>
    %123 = arith.addf %122, %121 : vector<8x128xf32>
    %124 = arith.divf %122, %123 : vector<8x128xf32>
    %125 = vector.extract_strided_slice %124 {offsets = [0, 0], sizes = [8, 32], strides = [1, 1]} : vector<8x128xf32> to vector<8x32xf32>
    %126 = vector.extract_strided_slice %124 {offsets = [0, 32], sizes = [8, 32], strides = [1, 1]} : vector<8x128xf32> to vector<8x32xf32>
    %127 = vector.extract_strided_slice %124 {offsets = [0, 96], sizes = [8, 32], strides = [1, 1]} : vector<8x128xf32> to vector<8x32xf32>
    %128 = vector.extract_strided_slice %119 {offsets = [0, 64], sizes = [8, 32], strides = [1, 1]} : vector<8x128xf32> to vector<8x32xf32>
    %129 = math.tanh %128 : vector<8x32xf32>
    %130 = arith.mulf %126, %114 : vector<8x32xf32>
    %131 = arith.mulf %125, %129 : vector<8x32xf32>
    %132 = arith.addf %130, %131 : vector<8x32xf32>
    %133 = math.tanh %132 : vector<8x32xf32>
    %134 = arith.mulf %127, %133 : vector<8x32xf32>
    %135 = vector.extract_strided_slice %6 {offsets = [56, 0], sizes = [8, 128], strides = [1, 1]} : vector<64x128xf32> to vector<8x128xf32>
    %cst_23 = arith.constant dense<0.000000e+00> : vector<8x128xf32>
    %136 = tpu.matmul %134, %2, %cst_23 {dimension_numbers = #tpu.dot_dimension_numbers<[1], [0], [0], [1], [0, 0, 1, 1], [], []>} : vector<8x32xf32>, vector<32x128xf32>, vector<8x128xf32> -> vector<8x128xf32>
    %137 = arith.addf %135, %136 : vector<8x128xf32>
    %138 = arith.negf %137 : vector<8x128xf32>
    %139 = math.exp %138 : vector<8x128xf32>
    %cst_24 = arith.constant 1.000000e+00 : f32
    %140 = vector.broadcast %cst_24 : f32 to vector<8x128xf32>
    %141 = arith.addf %140, %139 : vector<8x128xf32>
    %142 = arith.divf %140, %141 : vector<8x128xf32>
    %143 = vector.extract_strided_slice %142 {offsets = [0, 0], sizes = [8, 32], strides = [1, 1]} : vector<8x128xf32> to vector<8x32xf32>
    %144 = vector.extract_strided_slice %142 {offsets = [0, 32], sizes = [8, 32], strides = [1, 1]} : vector<8x128xf32> to vector<8x32xf32>
    %145 = vector.extract_strided_slice %142 {offsets = [0, 96], sizes = [8, 32], strides = [1, 1]} : vector<8x128xf32> to vector<8x32xf32>
    %146 = vector.extract_strided_slice %137 {offsets = [0, 64], sizes = [8, 32], strides = [1, 1]} : vector<8x128xf32> to vector<8x32xf32>
    %147 = math.tanh %146 : vector<8x32xf32>
    %148 = arith.mulf %144, %132 : vector<8x32xf32>
    %149 = arith.mulf %143, %147 : vector<8x32xf32>
    %150 = arith.addf %148, %149 : vector<8x32xf32>
    %151 = math.tanh %150 : vector<8x32xf32>
    %152 = arith.mulf %145, %151 : vector<8x32xf32>
    %153 = tpu.concatenate %26, %44, %62, %80, %98, %116, %134, %152 in 0 : vector<8x32xf32>, vector<8x32xf32>, vector<8x32xf32>, vector<8x32xf32>, vector<8x32xf32>, vector<8x32xf32>, vector<8x32xf32>, vector<8x32xf32> -> vector<64x32xf32>
    %c0_25 = arith.constant 0 : index
    %c0_26 = arith.constant 0 : index
    %154 = vector.load %arg4[%c0_25, %c0_26] : memref<32x128xf32, #tpu.memory_space<vmem>>, vector<32x128xf32>
    %c0_27 = arith.constant 0 : index
    %c0_28 = arith.constant 0 : index
    %155 = vector.load %arg5[%c0_27, %c0_28] : memref<32x128xf32, #tpu.memory_space<vmem>>, vector<32x128xf32>
    %c0_29 = arith.constant 0 : index
    %c0_30 = arith.constant 0 : index
    %156 = vector.load %arg6[%c0_29, %c0_30] : memref<1x128xf32, #tpu.memory_space<vmem>>, vector<1x128xf32>
    %cst_31 = arith.constant dense<0.000000e+00> : vector<64x128xf32>
    %157 = tpu.matmul %153, %154, %cst_31 {dimension_numbers = #tpu.dot_dimension_numbers<[1], [0], [0], [1], [0, 0, 1, 1], [], []>} : vector<64x32xf32>, vector<32x128xf32>, vector<64x128xf32> -> vector<64x128xf32>
    %158 = vector.broadcast %156 : vector<1x128xf32> to vector<64x128xf32>
    %159 = arith.addf %157, %158 : vector<64x128xf32>
    %cst_32 = arith.constant 0.000000e+00 : f32
    %160 = vector.broadcast %cst_32 : f32 to vector<8x32xf32>
    %cst_33 = arith.constant 0.000000e+00 : f32
    %161 = vector.broadcast %cst_33 : f32 to vector<8x32xf32>
    %162 = vector.extract_strided_slice %159 {offsets = [0, 0], sizes = [8, 128], strides = [1, 1]} : vector<64x128xf32> to vector<8x128xf32>
    %cst_34 = arith.constant dense<0.000000e+00> : vector<8x128xf32>
    %163 = tpu.matmul %160, %155, %cst_34 {dimension_numbers = #tpu.dot_dimension_numbers<[1], [0], [0], [1], [0, 0, 1, 1], [], []>} : vector<8x32xf32>, vector<32x128xf32>, vector<8x128xf32> -> vector<8x128xf32>
    %164 = arith.addf %162, %163 : vector<8x128xf32>
    %165 = arith.negf %164 : vector<8x128xf32>
    %166 = math.exp %165 : vector<8x128xf32>
    %cst_35 = arith.constant 1.000000e+00 : f32
    %167 = vector.broadcast %cst_35 : f32 to vector<8x128xf32>
    %168 = arith.addf %167, %166 : vector<8x128xf32>
    %169 = arith.divf %167, %168 : vector<8x128xf32>
    %170 = vector.extract_strided_slice %169 {offsets = [0, 0], sizes = [8, 32], strides = [1, 1]} : vector<8x128xf32> to vector<8x32xf32>
    %171 = vector.extract_strided_slice %169 {offsets = [0, 32], sizes = [8, 32], strides = [1, 1]} : vector<8x128xf32> to vector<8x32xf32>
    %172 = vector.extract_strided_slice %169 {offsets = [0, 96], sizes = [8, 32], strides = [1, 1]} : vector<8x128xf32> to vector<8x32xf32>
    %173 = vector.extract_strided_slice %164 {offsets = [0, 64], sizes = [8, 32], strides = [1, 1]} : vector<8x128xf32> to vector<8x32xf32>
    %174 = math.tanh %173 : vector<8x32xf32>
    %175 = arith.mulf %171, %161 : vector<8x32xf32>
    %176 = arith.mulf %170, %174 : vector<8x32xf32>
    %177 = arith.addf %175, %176 : vector<8x32xf32>
    %178 = math.tanh %177 : vector<8x32xf32>
    %179 = arith.mulf %172, %178 : vector<8x32xf32>
    %180 = vector.extract_strided_slice %159 {offsets = [8, 0], sizes = [8, 128], strides = [1, 1]} : vector<64x128xf32> to vector<8x128xf32>
    %cst_36 = arith.constant dense<0.000000e+00> : vector<8x128xf32>
    %181 = tpu.matmul %179, %155, %cst_36 {dimension_numbers = #tpu.dot_dimension_numbers<[1], [0], [0], [1], [0, 0, 1, 1], [], []>} : vector<8x32xf32>, vector<32x128xf32>, vector<8x128xf32> -> vector<8x128xf32>
    %182 = arith.addf %180, %181 : vector<8x128xf32>
    %183 = arith.negf %182 : vector<8x128xf32>
    %184 = math.exp %183 : vector<8x128xf32>
    %cst_37 = arith.constant 1.000000e+00 : f32
    %185 = vector.broadcast %cst_37 : f32 to vector<8x128xf32>
    %186 = arith.addf %185, %184 : vector<8x128xf32>
    %187 = arith.divf %185, %186 : vector<8x128xf32>
    %188 = vector.extract_strided_slice %187 {offsets = [0, 0], sizes = [8, 32], strides = [1, 1]} : vector<8x128xf32> to vector<8x32xf32>
    %189 = vector.extract_strided_slice %187 {offsets = [0, 32], sizes = [8, 32], strides = [1, 1]} : vector<8x128xf32> to vector<8x32xf32>
    %190 = vector.extract_strided_slice %187 {offsets = [0, 96], sizes = [8, 32], strides = [1, 1]} : vector<8x128xf32> to vector<8x32xf32>
    %191 = vector.extract_strided_slice %182 {offsets = [0, 64], sizes = [8, 32], strides = [1, 1]} : vector<8x128xf32> to vector<8x32xf32>
    %192 = math.tanh %191 : vector<8x32xf32>
    %193 = arith.mulf %189, %177 : vector<8x32xf32>
    %194 = arith.mulf %188, %192 : vector<8x32xf32>
    %195 = arith.addf %193, %194 : vector<8x32xf32>
    %196 = math.tanh %195 : vector<8x32xf32>
    %197 = arith.mulf %190, %196 : vector<8x32xf32>
    %198 = vector.extract_strided_slice %159 {offsets = [16, 0], sizes = [8, 128], strides = [1, 1]} : vector<64x128xf32> to vector<8x128xf32>
    %cst_38 = arith.constant dense<0.000000e+00> : vector<8x128xf32>
    %199 = tpu.matmul %197, %155, %cst_38 {dimension_numbers = #tpu.dot_dimension_numbers<[1], [0], [0], [1], [0, 0, 1, 1], [], []>} : vector<8x32xf32>, vector<32x128xf32>, vector<8x128xf32> -> vector<8x128xf32>
    %200 = arith.addf %198, %199 : vector<8x128xf32>
    %201 = arith.negf %200 : vector<8x128xf32>
    %202 = math.exp %201 : vector<8x128xf32>
    %cst_39 = arith.constant 1.000000e+00 : f32
    %203 = vector.broadcast %cst_39 : f32 to vector<8x128xf32>
    %204 = arith.addf %203, %202 : vector<8x128xf32>
    %205 = arith.divf %203, %204 : vector<8x128xf32>
    %206 = vector.extract_strided_slice %205 {offsets = [0, 0], sizes = [8, 32], strides = [1, 1]} : vector<8x128xf32> to vector<8x32xf32>
    %207 = vector.extract_strided_slice %205 {offsets = [0, 32], sizes = [8, 32], strides = [1, 1]} : vector<8x128xf32> to vector<8x32xf32>
    %208 = vector.extract_strided_slice %205 {offsets = [0, 96], sizes = [8, 32], strides = [1, 1]} : vector<8x128xf32> to vector<8x32xf32>
    %209 = vector.extract_strided_slice %200 {offsets = [0, 64], sizes = [8, 32], strides = [1, 1]} : vector<8x128xf32> to vector<8x32xf32>
    %210 = math.tanh %209 : vector<8x32xf32>
    %211 = arith.mulf %207, %195 : vector<8x32xf32>
    %212 = arith.mulf %206, %210 : vector<8x32xf32>
    %213 = arith.addf %211, %212 : vector<8x32xf32>
    %214 = math.tanh %213 : vector<8x32xf32>
    %215 = arith.mulf %208, %214 : vector<8x32xf32>
    %216 = vector.extract_strided_slice %159 {offsets = [24, 0], sizes = [8, 128], strides = [1, 1]} : vector<64x128xf32> to vector<8x128xf32>
    %cst_40 = arith.constant dense<0.000000e+00> : vector<8x128xf32>
    %217 = tpu.matmul %215, %155, %cst_40 {dimension_numbers = #tpu.dot_dimension_numbers<[1], [0], [0], [1], [0, 0, 1, 1], [], []>} : vector<8x32xf32>, vector<32x128xf32>, vector<8x128xf32> -> vector<8x128xf32>
    %218 = arith.addf %216, %217 : vector<8x128xf32>
    %219 = arith.negf %218 : vector<8x128xf32>
    %220 = math.exp %219 : vector<8x128xf32>
    %cst_41 = arith.constant 1.000000e+00 : f32
    %221 = vector.broadcast %cst_41 : f32 to vector<8x128xf32>
    %222 = arith.addf %221, %220 : vector<8x128xf32>
    %223 = arith.divf %221, %222 : vector<8x128xf32>
    %224 = vector.extract_strided_slice %223 {offsets = [0, 0], sizes = [8, 32], strides = [1, 1]} : vector<8x128xf32> to vector<8x32xf32>
    %225 = vector.extract_strided_slice %223 {offsets = [0, 32], sizes = [8, 32], strides = [1, 1]} : vector<8x128xf32> to vector<8x32xf32>
    %226 = vector.extract_strided_slice %223 {offsets = [0, 96], sizes = [8, 32], strides = [1, 1]} : vector<8x128xf32> to vector<8x32xf32>
    %227 = vector.extract_strided_slice %218 {offsets = [0, 64], sizes = [8, 32], strides = [1, 1]} : vector<8x128xf32> to vector<8x32xf32>
    %228 = math.tanh %227 : vector<8x32xf32>
    %229 = arith.mulf %225, %213 : vector<8x32xf32>
    %230 = arith.mulf %224, %228 : vector<8x32xf32>
    %231 = arith.addf %229, %230 : vector<8x32xf32>
    %232 = math.tanh %231 : vector<8x32xf32>
    %233 = arith.mulf %226, %232 : vector<8x32xf32>
    %234 = vector.extract_strided_slice %159 {offsets = [32, 0], sizes = [8, 128], strides = [1, 1]} : vector<64x128xf32> to vector<8x128xf32>
    %cst_42 = arith.constant dense<0.000000e+00> : vector<8x128xf32>
    %235 = tpu.matmul %233, %155, %cst_42 {dimension_numbers = #tpu.dot_dimension_numbers<[1], [0], [0], [1], [0, 0, 1, 1], [], []>} : vector<8x32xf32>, vector<32x128xf32>, vector<8x128xf32> -> vector<8x128xf32>
    %236 = arith.addf %234, %235 : vector<8x128xf32>
    %237 = arith.negf %236 : vector<8x128xf32>
    %238 = math.exp %237 : vector<8x128xf32>
    %cst_43 = arith.constant 1.000000e+00 : f32
    %239 = vector.broadcast %cst_43 : f32 to vector<8x128xf32>
    %240 = arith.addf %239, %238 : vector<8x128xf32>
    %241 = arith.divf %239, %240 : vector<8x128xf32>
    %242 = vector.extract_strided_slice %241 {offsets = [0, 0], sizes = [8, 32], strides = [1, 1]} : vector<8x128xf32> to vector<8x32xf32>
    %243 = vector.extract_strided_slice %241 {offsets = [0, 32], sizes = [8, 32], strides = [1, 1]} : vector<8x128xf32> to vector<8x32xf32>
    %244 = vector.extract_strided_slice %241 {offsets = [0, 96], sizes = [8, 32], strides = [1, 1]} : vector<8x128xf32> to vector<8x32xf32>
    %245 = vector.extract_strided_slice %236 {offsets = [0, 64], sizes = [8, 32], strides = [1, 1]} : vector<8x128xf32> to vector<8x32xf32>
    %246 = math.tanh %245 : vector<8x32xf32>
    %247 = arith.mulf %243, %231 : vector<8x32xf32>
    %248 = arith.mulf %242, %246 : vector<8x32xf32>
    %249 = arith.addf %247, %248 : vector<8x32xf32>
    %250 = math.tanh %249 : vector<8x32xf32>
    %251 = arith.mulf %244, %250 : vector<8x32xf32>
    %252 = vector.extract_strided_slice %159 {offsets = [40, 0], sizes = [8, 128], strides = [1, 1]} : vector<64x128xf32> to vector<8x128xf32>
    %cst_44 = arith.constant dense<0.000000e+00> : vector<8x128xf32>
    %253 = tpu.matmul %251, %155, %cst_44 {dimension_numbers = #tpu.dot_dimension_numbers<[1], [0], [0], [1], [0, 0, 1, 1], [], []>} : vector<8x32xf32>, vector<32x128xf32>, vector<8x128xf32> -> vector<8x128xf32>
    %254 = arith.addf %252, %253 : vector<8x128xf32>
    %255 = arith.negf %254 : vector<8x128xf32>
    %256 = math.exp %255 : vector<8x128xf32>
    %cst_45 = arith.constant 1.000000e+00 : f32
    %257 = vector.broadcast %cst_45 : f32 to vector<8x128xf32>
    %258 = arith.addf %257, %256 : vector<8x128xf32>
    %259 = arith.divf %257, %258 : vector<8x128xf32>
    %260 = vector.extract_strided_slice %259 {offsets = [0, 0], sizes = [8, 32], strides = [1, 1]} : vector<8x128xf32> to vector<8x32xf32>
    %261 = vector.extract_strided_slice %259 {offsets = [0, 32], sizes = [8, 32], strides = [1, 1]} : vector<8x128xf32> to vector<8x32xf32>
    %262 = vector.extract_strided_slice %259 {offsets = [0, 96], sizes = [8, 32], strides = [1, 1]} : vector<8x128xf32> to vector<8x32xf32>
    %263 = vector.extract_strided_slice %254 {offsets = [0, 64], sizes = [8, 32], strides = [1, 1]} : vector<8x128xf32> to vector<8x32xf32>
    %264 = math.tanh %263 : vector<8x32xf32>
    %265 = arith.mulf %261, %249 : vector<8x32xf32>
    %266 = arith.mulf %260, %264 : vector<8x32xf32>
    %267 = arith.addf %265, %266 : vector<8x32xf32>
    %268 = math.tanh %267 : vector<8x32xf32>
    %269 = arith.mulf %262, %268 : vector<8x32xf32>
    %270 = vector.extract_strided_slice %159 {offsets = [48, 0], sizes = [8, 128], strides = [1, 1]} : vector<64x128xf32> to vector<8x128xf32>
    %cst_46 = arith.constant dense<0.000000e+00> : vector<8x128xf32>
    %271 = tpu.matmul %269, %155, %cst_46 {dimension_numbers = #tpu.dot_dimension_numbers<[1], [0], [0], [1], [0, 0, 1, 1], [], []>} : vector<8x32xf32>, vector<32x128xf32>, vector<8x128xf32> -> vector<8x128xf32>
    %272 = arith.addf %270, %271 : vector<8x128xf32>
    %273 = arith.negf %272 : vector<8x128xf32>
    %274 = math.exp %273 : vector<8x128xf32>
    %cst_47 = arith.constant 1.000000e+00 : f32
    %275 = vector.broadcast %cst_47 : f32 to vector<8x128xf32>
    %276 = arith.addf %275, %274 : vector<8x128xf32>
    %277 = arith.divf %275, %276 : vector<8x128xf32>
    %278 = vector.extract_strided_slice %277 {offsets = [0, 0], sizes = [8, 32], strides = [1, 1]} : vector<8x128xf32> to vector<8x32xf32>
    %279 = vector.extract_strided_slice %277 {offsets = [0, 32], sizes = [8, 32], strides = [1, 1]} : vector<8x128xf32> to vector<8x32xf32>
    %280 = vector.extract_strided_slice %277 {offsets = [0, 96], sizes = [8, 32], strides = [1, 1]} : vector<8x128xf32> to vector<8x32xf32>
    %281 = vector.extract_strided_slice %272 {offsets = [0, 64], sizes = [8, 32], strides = [1, 1]} : vector<8x128xf32> to vector<8x32xf32>
    %282 = math.tanh %281 : vector<8x32xf32>
    %283 = arith.mulf %279, %267 : vector<8x32xf32>
    %284 = arith.mulf %278, %282 : vector<8x32xf32>
    %285 = arith.addf %283, %284 : vector<8x32xf32>
    %286 = math.tanh %285 : vector<8x32xf32>
    %287 = arith.mulf %280, %286 : vector<8x32xf32>
    %288 = vector.extract_strided_slice %159 {offsets = [56, 0], sizes = [8, 128], strides = [1, 1]} : vector<64x128xf32> to vector<8x128xf32>
    %cst_48 = arith.constant dense<0.000000e+00> : vector<8x128xf32>
    %289 = tpu.matmul %287, %155, %cst_48 {dimension_numbers = #tpu.dot_dimension_numbers<[1], [0], [0], [1], [0, 0, 1, 1], [], []>} : vector<8x32xf32>, vector<32x128xf32>, vector<8x128xf32> -> vector<8x128xf32>
    %290 = arith.addf %288, %289 : vector<8x128xf32>
    %291 = arith.negf %290 : vector<8x128xf32>
    %292 = math.exp %291 : vector<8x128xf32>
    %cst_49 = arith.constant 1.000000e+00 : f32
    %293 = vector.broadcast %cst_49 : f32 to vector<8x128xf32>
    %294 = arith.addf %293, %292 : vector<8x128xf32>
    %295 = arith.divf %293, %294 : vector<8x128xf32>
    %296 = vector.extract_strided_slice %295 {offsets = [0, 0], sizes = [8, 32], strides = [1, 1]} : vector<8x128xf32> to vector<8x32xf32>
    %297 = vector.extract_strided_slice %295 {offsets = [0, 32], sizes = [8, 32], strides = [1, 1]} : vector<8x128xf32> to vector<8x32xf32>
    %298 = vector.extract_strided_slice %295 {offsets = [0, 96], sizes = [8, 32], strides = [1, 1]} : vector<8x128xf32> to vector<8x32xf32>
    %299 = vector.extract_strided_slice %290 {offsets = [0, 64], sizes = [8, 32], strides = [1, 1]} : vector<8x128xf32> to vector<8x32xf32>
    %300 = math.tanh %299 : vector<8x32xf32>
    %301 = arith.mulf %297, %285 : vector<8x32xf32>
    %302 = arith.mulf %296, %300 : vector<8x32xf32>
    %303 = arith.addf %301, %302 : vector<8x32xf32>
    %304 = math.tanh %303 : vector<8x32xf32>
    %305 = arith.mulf %298, %304 : vector<8x32xf32>
    %c0_50 = arith.constant 0 : index
    %c0_51 = arith.constant 0 : index
    %306 = vector.load %arg7[%c0_50, %c0_51] : memref<32x1xf32, #tpu.memory_space<vmem>>, vector<32x1xf32>
    %cst_52 = arith.constant dense<0.000000e+00> : vector<8x1xf32>
    %307 = tpu.matmul %305, %306, %cst_52 {dimension_numbers = #tpu.dot_dimension_numbers<[1], [0], [0], [1], [0, 0, 1, 1], [], []>} : vector<8x32xf32>, vector<32x1xf32>, vector<8x1xf32> -> vector<8x1xf32>
    %c0_53 = arith.constant 0 : index
    %c0_54 = arith.constant 0 : index
    %308 = vector.load %arg8[%c0_53, %c0_54] : memref<1x1xf32, #tpu.memory_space<vmem>>, vector<1x1xf32>
    %309 = vector.broadcast %308 : vector<1x1xf32> to vector<8x1xf32>
    %310 = arith.addf %307, %309 : vector<8x1xf32>
    %c0_55 = arith.constant 0 : index
    %c0_56 = arith.constant 0 : index
    %311 = vector.load %arg9[%c0_55, %c0_56] : memref<8x1xf32, #tpu.memory_space<vmem>>, vector<8x1xf32>
    tpu.vector_store %arg9[%c0_55, %c0_56], %310 {strides = array<i32>} : memref<8x1xf32, #tpu.memory_space<vmem>>, vector<8x1xf32>,
    return
  }
}

</mosaic_0001>

<llo_original>
// kernel: tpu_custom_call.1
$region0: #{tpu_custom_call.1}
  #allocation0 [shape = 'u32[]', space=smem, size = 0x4, offset = 0x4, fixed_abs, tag = 'smem constant byte address 0x4 - core index']
  #allocation1 [shape = 'u32[144,128]{1,0:T(1,128)}', space=vmem, size = 0x12000, scoped, tag = 'internal scratch']
  #allocation2 [shape = 'f32[1,1]{1,0:T(1,128)S(1)}', space=vmem, size = 0x200, scoped, tag = 'scoped memory for tpu_custom_call.1']
  %s0 = inlined_call_operand.vmem [shape: f32[64,4], index: 0, kind: input, shape index: {}]
  %s1 = inlined_call_operand.vmem [shape: f32[4,128], index: 1, kind: input, shape index: {}]
  %s2 = inlined_call_operand.vmem [shape: f32[32,128], index: 2, kind: input, shape index: {}]
  %s3 = inlined_call_operand.vmem [shape: f32[1,128], index: 3, kind: input, shape index: {}]
  %s4 = inlined_call_operand.vmem [shape: f32[32,128], index: 4, kind: input, shape index: {}]
  %s5 = inlined_call_operand.vmem [shape: f32[32,128], index: 5, kind: input, shape index: {}]
  %s6 = inlined_call_operand.vmem [shape: f32[1,128], index: 6, kind: input, shape index: {}]
  %s7 = inlined_call_operand.vmem [shape: f32[32,1], index: 7, kind: input, shape index: {}]
  %s8 = inlined_call_operand.<no memory space> [shape: f32[1,1], index: 8, kind: input, shape index: {}]
  %s9 = inlined_call_operand.vmem [shape: f32[8,1], index: 9, kind: output, shape index: {}]
  %s10 = sld [smem:[#allocation0]]
  $region46: #{tpu_custom_call.1} parent=0
    _
  %s12 = ssub.s32 1, %s10
  %s13 = scalar_select 0, %s12, %s10
  %v14 = vstv %s8
  %15 = vst [vmem:[#allocation2] sm:$0x1] %v14
  // Predicated region
  $region2: #{tpu_custom_call.1} parent=0 // pred_check
    _
  $region3: #{tpu_custom_call.1} parent=0 // pred_check_branch
    %17 = sbr.rel (0) target = $region5
  $region4: #{tpu_custom_call.1} parent=0 // pred_region
    _
  $region5: #{tpu_custom_call.1} parent=0 // pred_fallthru
    _
  // Predicated region
  $region6: #{tpu_custom_call.1} parent=0 // pred_check
    _
  $region7: #{tpu_custom_call.1} parent=0 // pred_check_branch
    %19 = sbr.rel (0) target = $region9
  $region8: #{tpu_custom_call.1} parent=0 // pred_region
    _
  $region9: #{tpu_custom_call.1} parent=0 // pred_fallthru
    _
  // Predicated region
  $region10: #{tpu_custom_call.1} parent=0 // pred_check
    _
  $region11: #{tpu_custom_call.1} parent=0 // pred_check_branch
    %21 = sbr.rel (0) target = $region13
  $region12: #{tpu_custom_call.1} parent=0 // pred_region
    _
  $region13: #{tpu_custom_call.1} parent=0 // pred_fallthru
    _
  // Predicated region
  $region14: #{tpu_custom_call.1} parent=0 // pred_check
    _
  $region15: #{tpu_custom_call.1} parent=0 // pred_check_branch
    %23 = sbr.rel (0) target = $region17
  $region16: #{tpu_custom_call.1} parent=0 // pred_region
    _
  $region17: #{tpu_custom_call.1} parent=0 // pred_fallthru
    _
  // Predicated region
  $region18: #{tpu_custom_call.1} parent=0 // pred_check
    _
  $region19: #{tpu_custom_call.1} parent=0 // pred_check_branch
    %25 = sbr.rel (0) target = $region21
  $region20: #{tpu_custom_call.1} parent=0 // pred_region
    _
  $region21: #{tpu_custom_call.1} parent=0 // pred_fallthru
    _
  // Predicated region
  $region22: #{tpu_custom_call.1} parent=0 // pred_check
    _
  $region23: #{tpu_custom_call.1} parent=0 // pred_check_branch
    %27 = sbr.rel (0) target = $region25
  $region24: #{tpu_custom_call.1} parent=0 // pred_region
    _
  $region25: #{tpu_custom_call.1} parent=0 // pred_fallthru
    _
  // Predicated region
  $region26: #{tpu_custom_call.1} parent=0 // pred_check
    _
  $region27: #{tpu_custom_call.1} parent=0 // pred_check_branch
    %29 = sbr.rel (0) target = $region29
  $region28: #{tpu_custom_call.1} parent=0 // pred_region
    _
  $region29: #{tpu_custom_call.1} parent=0 // pred_fallthru
    _
  // Predicated region
  $region30: #{tpu_custom_call.1} parent=0 // pred_check
    _
  $region31: #{tpu_custom_call.1} parent=0 // pred_check_branch
    %31 = sbr.rel (0) target = $region33
  $region32: #{tpu_custom_call.1} parent=0 // pred_region
    _
  $region33: #{tpu_custom_call.1} parent=0 // pred_fallthru
    _
  // Predicated region
  $region34: #{tpu_custom_call.1} parent=0 // pred_check
    _
  $region35: #{tpu_custom_call.1} parent=0 // pred_check_branch
    %33 = sbr.rel (0) target = $region37
  $region36: #{tpu_custom_call.1} parent=0 // pred_region
    _
  $region37: #{tpu_custom_call.1} parent=0 // pred_fallthru
    _
  %v34 = vld [vmem:[%s0] sm:$0xff]
  %v35 = vld [vmem:[%s0 + $0x8] sm:$0xff]
  %v36 = vld [vmem:[%s0 + $0x10] sm:$0xff]
  %v37 = vld [vmem:[%s0 + $0x18] sm:$0xff]
  %v38 = vld [vmem:[%s0 + $0x20] sm:$0xff]
  %v39 = vld [vmem:[%s0 + $0x28] sm:$0xff]
  %v40 = vld [vmem:[%s0 + $0x30] sm:$0xff]
  %v41 = vld [vmem:[%s0 + $0x38] sm:$0xff]
  %v42 = vld [vmem:[%s1] sm:$0xf]
  %v43 = vld [vmem:[%s2] sm:$0xff]
  %v44 = vld [vmem:[%s2 + $0x8] sm:$0xff]
  %v45 = vld [vmem:[%s2 + $0x10] sm:$0xff]
  %v46 = vld [vmem:[%s2 + $0x18] sm:$0xff]
  %v47 = vld [vmem:[%s3] sm:$0x1]
  %v49 = vlaneseq
  %v50 = vshrl.u32 %v49, 7
  %v51 = vsub.s32 0, %v50
  %v52 = vrot.slane %v47, %v51
  %vm54 = vcmask 31744
  %v56 = vsel %vm54, %v34, 0
  %v59 = vsel %vm54, %v35, 0
  %v62 = vsel %vm54, %v36, 0
  %v65 = vsel %vm54, %v37, 0
  %v68 = vsel %vm54, %v38, 0
  %v71 = vsel %vm54, %v39, 0
  %v74 = vsel %vm54, %v40, 0
  %v77 = vsel %vm54, %v41, 0
  %vm79 = vcmask 1043456
  %v81 = vsel %vm79, %v42, 0
  %83 = vmatprep.subr.mxu0 0.0
  %84 = vmatpush1.msra.mxu0 %v81
  %85 = vmatprep.subr.mxu0 0.0
  %86 = vmatpush1.msra.mxu0 0.0
  %87 = vmatprep.subr.mxu0 0.0
  %88 = vmatpush1.msra.mxu0 0.0
  %89 = vmatprep.subr.mxu0 0.0
  %90 = vmatpush1.msra.mxu0 0.0
  %91 = vmatprep.subr.mxu0 0.0
  %92 = vmatpush1.msra.mxu0 0.0
  %93 = vmatprep.subr.mxu0 0.0
  %94 = vmatpush1.msra.mxu0 0.0
  %95 = vmatprep.subr.mxu0 0.0
  %96 = vmatpush1.msra.mxu0 0.0
  %97 = vmatprep.subr.mxu0 0.0
  %98 = vmatpush1.msra.mxu0 0.0
  %99 = vmatprep.subr.mxu0 0.0
  %100 = vmatpush1.msra.mxu0 0.0
  %101 = vmatprep.subr.mxu0 0.0
  %102 = vmatpush1.msra.mxu0 0.0
  %103 = vmatprep.subr.mxu0 0.0
  %104 = vmatpush1.msra.mxu0 0.0
  %105 = vmatprep.subr.mxu0 0.0
  %106 = vmatpush1.msra.mxu0 0.0
  %107 = vmatprep.subr.mxu0 0.0
  %108 = vmatpush1.msra.mxu0 0.0
  %109 = vmatprep.subr.mxu0 0.0
  %110 = vmatpush1.msra.mxu0 0.0
  %111 = vmatprep.subr.mxu0 0.0
  %112 = vmatpush1.msra.mxu0 0.0
  %113 = vmatprep.subr.mxu0 0.0
  %114 = vmatpush1.msra.mxu0 0.0
  %115 = vmatprep.subr.mxu0 0.0
  %116 = vmatpush1.msra.mxu0 0.0
  %117 = vmatprep.subr.mxu0 0.0
  %118 = vmatpush1.msra.mxu0 0.0
  %119 = vmatprep.subr.mxu0 0.0
  %120 = vmatpush1.msra.mxu0 0.0
  %121 = vmatprep.subr.mxu0 0.0
  %122 = vmatpush1.msra.mxu0 0.0
  %123 = vmatprep.subr.mxu0 0.0
  %124 = vmatpush1.msra.mxu0 0.0
  %125 = vmatprep.subr.mxu0 0.0
  %126 = vmatpush1.msra.mxu0 0.0
  %127 = vmatprep.subr.mxu0 0.0
  %128 = vmatpush1.msra.mxu0 0.0
  %129 = vmatprep.subr.mxu0 0.0
  %130 = vmatpush1.msra.mxu0 0.0
  %131 = vmatprep.subr.mxu0 0.0
  %132 = vmatpush1.msra.mxu0 0.0
  %133 = vmatprep.subr.mxu0 0.0
  %134 = vmatpush1.msra.mxu0 0.0
  %135 = vmatprep.subr.mxu0 0.0
  %136 = vmatpush1.msra.mxu0 0.0
  %137 = vmatprep.subr.mxu0 0.0
  %138 = vmatpush1.msra.mxu0 0.0
  %139 = vmatprep.subr.mxu0 0.0
  %140 = vmatpush1.msra.mxu0 0.0
  %141 = vmatprep.subr.mxu0 0.0
  %142 = vmatpush1.msra.mxu0 0.0
  %143 = vmatprep.subr.mxu0 0.0
  %144 = vmatpush1.msra.mxu0 0.0
  %145 = vmatprep.subr.mxu0 0.0
  %146 = vmatpush1.msra.mxu0 0.0
  %147 = vmatprep.mubr.f32.mxu0 0.0
  %148 = vmatmul.mubr.f32.gmra.mrb[0].mxu0 %v56
  %v149 = vpop.f32.mrb[0].mxu0
  %v150 = vadd.f32 %v52, %v149
  %v151 = vpop.f32.mrb[0].mxu0
  %152 = vmatprep.mubr.f32.mxu0 0.0
  %153 = vmatmul.mubr.f32.gmra.mrb[0].mxu0 %v59
  %v154 = vpop.f32.mrb[0].mxu0
  %v155 = vadd.f32 %v52, %v154
  %v156 = vpop.f32.mrb[0].mxu0
  %157 = vmatprep.mubr.f32.mxu0 0.0
  %158 = vmatmul.mubr.f32.gmra.mrb[0].mxu0 %v62
  %v159 = vpop.f32.mrb[0].mxu0
  %v160 = vadd.f32 %v52, %v159
  %v161 = vpop.f32.mrb[0].mxu0
  %162 = vmatprep.mubr.f32.mxu0 0.0
  %163 = vmatmul.mubr.f32.gmra.mrb[0].mxu0 %v65
  %v164 = vpop.f32.mrb[0].mxu0
  %v165 = vadd.f32 %v52, %v164
  %v166 = vpop.f32.mrb[0].mxu0
  %167 = vmatprep.mubr.f32.mxu0 0.0
  %168 = vmatmul.mubr.f32.gmra.mrb[0].mxu0 %v68
  %v169 = vpop.f32.mrb[0].mxu0
  %v170 = vadd.f32 %v52, %v169
  %v171 = vpop.f32.mrb[0].mxu0
  %172 = vmatprep.mubr.f32.mxu0 0.0
  %173 = vmatmul.mubr.f32.gmra.mrb[0].mxu0 %v71
  %v174 = vpop.f32.mrb[0].mxu0
  %v175 = vadd.f32 %v52, %v174
  %v176 = vpop.f32.mrb[0].mxu0
  %177 = vmatprep.mubr.f32.mxu0 0.0
  %178 = vmatmul.mubr.f32.gmra.mrb[0].mxu0 %v74
  %v179 = vpop.f32.mrb[0].mxu0
  %v180 = vadd.f32 %v52, %v179
  %v181 = vpop.f32.mrb[0].mxu0
  %182 = vmatprep.mubr.f32.mxu0 0.0
  %183 = vmatmul.mubr.f32.gmra.mrb[0].mxu0 %v77
  %v184 = vpop.f32.mrb[0].mxu0
  %v185 = vadd.f32 %v52, %v184
  %v186 = vpop.f32.mrb[0].mxu0
  %187 = vdwg.mxu0
  %vm188 = vcmask 261120
  %v190 = vsel %vm188, 0.0, 0
  %192 = vmatprep.subr.mxu0 0.0
  %193 = vmatpush1.msra.mxu0 %v43
  %194 = vmatprep.subr.mxu0 0.0
  %195 = vmatpush1.msra.mxu0 %v44
  %196 = vmatprep.subr.mxu0 0.0
  %197 = vmatpush1.msra.mxu0 %v45
  %198 = vmatprep.subr.mxu0 0.0
  %199 = vmatpush1.msra.mxu0 %v46
  %200 = vmatprep.subr.mxu0 0.0
  %201 = vmatpush1.msra.mxu0 0.0
  %202 = vmatprep.subr.mxu0 0.0
  %203 = vmatpush1.msra.mxu0 0.0
  %204 = vmatprep.subr.mxu0 0.0
  %205 = vmatpush1.msra.mxu0 0.0
  %206 = vmatprep.subr.mxu0 0.0
  %207 = vmatpush1.msra.mxu0 0.0
  %208 = vmatprep.subr.mxu0 0.0
  %209 = vmatpush1.msra.mxu0 0.0
  %210 = vmatprep.subr.mxu0 0.0
  %211 = vmatpush1.msra.mxu0 0.0
  %212 = vmatprep.subr.mxu0 0.0
  %213 = vmatpush1.msra.mxu0 0.0
  %214 = vmatprep.subr.mxu0 0.0
  %215 = vmatpush1.msra.mxu0 0.0
  %216 = vmatprep.subr.mxu0 0.0
  %217 = vmatpush1.msra.mxu0 0.0
  %218 = vmatprep.subr.mxu0 0.0
  %219 = vmatpush1.msra.mxu0 0.0
  %220 = vmatprep.subr.mxu0 0.0
  %221 = vmatpush1.msra.mxu0 0.0
  %222 = vmatprep.subr.mxu0 0.0
  %223 = vmatpush1.msra.mxu0 0.0
  %224 = vmatprep.subr.mxu0 0.0
  %225 = vmatpush1.msra.mxu0 0.0
  %226 = vmatprep.subr.mxu0 0.0
  %227 = vmatpush1.msra.mxu0 0.0
  %228 = vmatprep.subr.mxu0 0.0
  %229 = vmatpush1.msra.mxu0 0.0
  %230 = vmatprep.subr.mxu0 0.0
  %231 = vmatpush1.msra.mxu0 0.0
  %232 = vmatprep.subr.mxu0 0.0
  %233 = vmatpush1.msra.mxu0 0.0
  %234 = vmatprep.subr.mxu0 0.0
  %235 = vmatpush1.msra.mxu0 0.0
  %236 = vmatprep.subr.mxu0 0.0
  %237 = vmatpush1.msra.mxu0 0.0
  %238 = vmatprep.subr.mxu0 0.0
  %239 = vmatpush1.msra.mxu0 0.0
  %240 = vmatprep.subr.mxu0 0.0
  %241 = vmatpush1.msra.mxu0 0.0
  %242 = vmatprep.subr.mxu0 0.0
  %243 = vmatpush1.msra.mxu0 0.0
  %244 = vmatprep.subr.mxu0 0.0
  %245 = vmatpush1.msra.mxu0 0.0
  %246 = vmatprep.subr.mxu0 0.0
  %247 = vmatpush1.msra.mxu0 0.0
  %248 = vmatprep.subr.mxu0 0.0
  %249 = vmatpush1.msra.mxu0 0.0
  %250 = vmatprep.subr.mxu0 0.0
  %251 = vmatpush1.msra.mxu0 0.0
  %252 = vmatprep.subr.mxu0 0.0
  %253 = vmatpush1.msra.mxu0 0.0
  %254 = vmatprep.subr.mxu0 0.0
  %255 = vmatpush1.msra.mxu0 0.0
  %256 = vmatprep.mubr.f32.mxu0 0.0
  %257 = vmatmul.mubr.f32.gmra.mrb[0].mxu0 %v190
  %v258 = vpop.f32.mrb[0].mxu0
  %v259 = vadd.f32 0.0, %v258
  %v260 = vpop.f32.mrb[0].mxu0
  %261 = vdwg.mxu0
  %v262 = vadd.f32 %v150, %v259
  %v263 = vxor.u32 %v262, 2147483648
  %v264 = vmul.f32 %v263, 1.442695
  %v265 = vpow.pop %v264
  %v266 = vadd.f32 %v265, 1.0
  %v267 = vrcp.pop %v266
  %v268 = vmul.f32 1.0, %v267
  %v269 = vtanh.pop %v262
  %v270 = vmul.f32 %v268, 0.0
  %272 = vrot.lane.b32.xlu0 %v269, 64
  %v273 = vpop.permute.xlu0 %272
  %v275 = vmul.f32 %v268, %v273
  %277 = vrot.lane.b32.xlu0 %v275, 32
  %v278 = vpop.permute.xlu0 %277
  %v280 = vadd.f32 %v270, %v278
  %v281 = vtanh.pop %v280
  %283 = vrot.lane.b32.xlu0 %v281, 64
  %v284 = vpop.permute.xlu0 %283
  %v286 = vmul.f32 %v268, %v284
  %288 = vrot.lane.b32.xlu0 %v286, 32
  %v289 = vpop.permute.xlu0 %288
  %v290 = vsel %vm188, %v289, 0
  %292 = vmatprep.subr.mxu0 0.0
  %293 = vmatpush1.msra.mxu0 %v43
  %294 = vmatprep.subr.mxu0 0.0
  %295 = vmatpush1.msra.mxu0 %v44
  %296 = vmatprep.subr.mxu0 0.0
  %297 = vmatpush1.msra.mxu0 %v45
  %298 = vmatprep.subr.mxu0 0.0
  %299 = vmatpush1.msra.mxu0 %v46
  %300 = vmatprep.subr.mxu0 0.0
  %301 = vmatpush1.msra.mxu0 0.0
  %302 = vmatprep.subr.mxu0 0.0
  %303 = vmatpush1.msra.mxu0 0.0
  %304 = vmatprep.subr.mxu0 0.0
  %305 = vmatpush1.msra.mxu0 0.0
  %306 = vmatprep.subr.mxu0 0.0
  %307 = vmatpush1.msra.mxu0 0.0
  %308 = vmatprep.subr.mxu0 0.0
  %309 = vmatpush1.msra.mxu0 0.0
  %310 = vmatprep.subr.mxu0 0.0
  %311 = vmatpush1.msra.mxu0 0.0
  %312 = vmatprep.subr.mxu0 0.0
  %313 = vmatpush1.msra.mxu0 0.0
  %314 = vmatprep.subr.mxu0 0.0
  %315 = vmatpush1.msra.mxu0 0.0
  %316 = vmatprep.subr.mxu0 0.0
  %317 = vmatpush1.msra.mxu0 0.0
  %318 = vmatprep.subr.mxu0 0.0
  %319 = vmatpush1.msra.mxu0 0.0
  %320 = vmatprep.subr.mxu0 0.0
  %321 = vmatpush1.msra.mxu0 0.0
  %322 = vmatprep.subr.mxu0 0.0
  %323 = vmatpush1.msra.mxu0 0.0
  %324 = vmatprep.subr.mxu0 0.0
  %325 = vmatpush1.msra.mxu0 0.0
  %326 = vmatprep.subr.mxu0 0.0
  %327 = vmatpush1.msra.mxu0 0.0
  %328 = vmatprep.subr.mxu0 0.0
  %329 = vmatpush1.msra.mxu0 0.0
  %330 = vmatprep.subr.mxu0 0.0
  %331 = vmatpush1.msra.mxu0 0.0
  %332 = vmatprep.subr.mxu0 0.0
  %333 = vmatpush1.msra.mxu0 0.0
  %334 = vmatprep.subr.mxu0 0.0
  %335 = vmatpush1.msra.mxu0 0.0
  %336 = vmatprep.subr.mxu0 0.0
  %337 = vmatpush1.msra.mxu0 0.0
  %338 = vmatprep.subr.mxu0 0.0
  %339 = vmatpush1.msra.mxu0 0.0
  %340 = vmatprep.subr.mxu0 0.0
  %341 = vmatpush1.msra.mxu0 0.0
  %342 = vmatprep.subr.mxu0 0.0
  %343 = vmatpush1.msra.mxu0 0.0
  %344 = vmatprep.subr.mxu0 0.0
  %345 = vmatpush1.msra.mxu0 0.0
  %346 = vmatprep.subr.mxu0 0.0
  %347 = vmatpush1.msra.mxu0 0.0
  %348 = vmatprep.subr.mxu0 0.0
  %349 = vmatpush1.msra.mxu0 0.0
  %350 = vmatprep.subr.mxu0 0.0
  %351 = vmatpush1.msra.mxu0 0.0
  %352 = vmatprep.subr.mxu0 0.0
  %353 = vmatpush1.msra.mxu0 0.0
  %354 = vmatprep.subr.mxu0 0.0
  %355 = vmatpush1.msra.mxu0 0.0
  %356 = vmatprep.mubr.f32.mxu0 0.0
  %357 = vmatmul.mubr.f32.gmra.mrb[0].mxu0 %v290
  %v358 = vpop.f32.mrb[0].mxu0
  %v359 = vadd.f32 0.0, %v358
  %v360 = vpop.f32.mrb[0].mxu0
  %361 = vdwg.mxu0
  %v362 = vadd.f32 %v155, %v359
  %v363 = vxor.u32 %v362, 2147483648
  %v364 = vmul.f32 %v363, 1.442695
  %v365 = vpow.pop %v364
  %v366 = vadd.f32 %v365, 1.0
  %v367 = vrcp.pop %v366
  %v368 = vmul.f32 1.0, %v367
  %v369 = vtanh.pop %v362
  %v370 = vmul.f32 %v368, %v280
  %372 = vrot.lane.b32.xlu0 %v369, 64
  %v373 = vpop.permute.xlu0 %372
  %v375 = vmul.f32 %v368, %v373
  %377 = vrot.lane.b32.xlu0 %v375, 32
  %v378 = vpop.permute.xlu0 %377
  %v380 = vadd.f32 %v370, %v378
  %v381 = vtanh.pop %v380
  %383 = vrot.lane.b32.xlu0 %v381, 64
  %v384 = vpop.permute.xlu0 %383
  %v386 = vmul.f32 %v368, %v384
  %388 = vrot.lane.b32.xlu0 %v386, 32
  %v389 = vpop.permute.xlu0 %388
  %v390 = vsel %vm188, %v389, 0
  %392 = vmatprep.subr.mxu0 0.0
  %393 = vmatpush1.msra.mxu0 %v43
  %394 = vmatprep.subr.mxu0 0.0
  %395 = vmatpush1.msra.mxu0 %v44
  %396 = vmatprep.subr.mxu0 0.0
  %397 = vmatpush1.msra.mxu0 %v45
  %398 = vmatprep.subr.mxu0 0.0
  %399 = vmatpush1.msra.mxu0 %v46
  %400 = vmatprep.subr.mxu0 0.0
  %401 = vmatpush1.msra.mxu0 0.0
  %402 = vmatprep.subr.mxu0 0.0
  %403 = vmatpush1.msra.mxu0 0.0
  %404 = vmatprep.subr.mxu0 0.0
  %405 = vmatpush1.msra.mxu0 0.0
  %406 = vmatprep.subr.mxu0 0.0
  %407 = vmatpush1.msra.mxu0 0.0
  %408 = vmatprep.subr.mxu0 0.0
  %409 = vmatpush1.msra.mxu0 0.0
  %410 = vmatprep.subr.mxu0 0.0
  %411 = vmatpush1.msra.mxu0 0.0
  %412 = vmatprep.subr.mxu0 0.0
  %413 = vmatpush1.msra.mxu0 0.0
  %414 = vmatprep.subr.mxu0 0.0
  %415 = vmatpush1.msra.mxu0 0.0
  %416 = vmatprep.subr.mxu0 0.0
  %417 = vmatpush1.msra.mxu0 0.0
  %418 = vmatprep.subr.mxu0 0.0
  %419 = vmatpush1.msra.mxu0 0.0
  %420 = vmatprep.subr.mxu0 0.0
  %421 = vmatpush1.msra.mxu0 0.0
  %422 = vmatprep.subr.mxu0 0.0
  %423 = vmatpush1.msra.mxu0 0.0
  %424 = vmatprep.subr.mxu0 0.0
  %425 = vmatpush1.msra.mxu0 0.0
  %426 = vmatprep.subr.mxu0 0.0
  %427 = vmatpush1.msra.mxu0 0.0
  %428 = vmatprep.subr.mxu0 0.0
  %429 = vmatpush1.msra.mxu0 0.0
  %430 = vmatprep.subr.mxu0 0.0
  %431 = vmatpush1.msra.mxu0 0.0
  %432 = vmatprep.subr.mxu0 0.0
  %433 = vmatpush1.msra.mxu0 0.0
  %434 = vmatprep.subr.mxu0 0.0
  %435 = vmatpush1.msra.mxu0 0.0
  %436 = vmatprep.subr.mxu0 0.0
  %437 = vmatpush1.msra.mxu0 0.0
  %438 = vmatprep.subr.mxu0 0.0
  %439 = vmatpush1.msra.mxu0 0.0
  %440 = vmatprep.subr.mxu0 0.0
  %441 = vmatpush1.msra.mxu0 0.0
  %442 = vmatprep.subr.mxu0 0.0
  %443 = vmatpush1.msra.mxu0 0.0
  %444 = vmatprep.subr.mxu0 0.0
  %445 = vmatpush1.msra.mxu0 0.0
  %446 = vmatprep.subr.mxu0 0.0
  %447 = vmatpush1.msra.mxu0 0.0
  %448 = vmatprep.subr.mxu0 0.0
  %449 = vmatpush1.msra.mxu0 0.0
  %450 = vmatprep.subr.mxu0 0.0
  %451 = vmatpush1.msra.mxu0 0.0
  %452 = vmatprep.subr.mxu0 0.0
  %453 = vmatpush1.msra.mxu0 0.0
  %454 = vmatprep.subr.mxu0 0.0
  %455 = vmatpush1.msra.mxu0 0.0
  %456 = vmatprep.mubr.f32.mxu0 0.0
  %457 = vmatmul.mubr.f32.gmra.mrb[0].mxu0 %v390
  %v458 = vpop.f32.mrb[0].mxu0
  %v459 = vadd.f32 0.0, %v458
  %v460 = vpop.f32.mrb[0].mxu0
  %461 = vdwg.mxu0
  %v462 = vadd.f32 %v160, %v459
  %v463 = vxor.u32 %v462, 2147483648
  %v464 = vmul.f32 %v463, 1.442695
  %v465 = vpow.pop %v464
  %v466 = vadd.f32 %v465, 1.0
  %v467 = vrcp.pop %v466
  %v468 = vmul.f32 1.0, %v467
  %v469 = vtanh.pop %v462
  %v470 = vmul.f32 %v468, %v380
  %472 = vrot.lane.b32.xlu0 %v469, 64
  %v473 = vpop.permute.xlu0 %472
  %v475 = vmul.f32 %v468, %v473
  %477 = vrot.lane.b32.xlu0 %v475, 32
  %v478 = vpop.permute.xlu0 %477
  %v480 = vadd.f32 %v470, %v478
  %v481 = vtanh.pop %v480
  %483 = vrot.lane.b32.xlu0 %v481, 64
  %v484 = vpop.permute.xlu0 %483
  %v486 = vmul.f32 %v468, %v484
  %488 = vrot.lane.b32.xlu0 %v486, 32
  %v489 = vpop.permute.xlu0 %488
  %v490 = vsel %vm188, %v489, 0
  %492 = vmatprep.subr.mxu0 0.0
  %493 = vmatpush1.msra.mxu0 %v43
  %494 = vmatprep.subr.mxu0 0.0
  %495 = vmatpush1.msra.mxu0 %v44
  %496 = vmatprep.subr.mxu0 0.0
  %497 = vmatpush1.msra.mxu0 %v45
  %498 = vmatprep.subr.mxu0 0.0
  %499 = vmatpush1.msra.mxu0 %v46
  %500 = vmatprep.subr.mxu0 0.0
  %501 = vmatpush1.msra.mxu0 0.0
  %502 = vmatprep.subr.mxu0 0.0
  %503 = vmatpush1.msra.mxu0 0.0
  %504 = vmatprep.subr.mxu0 0.0
  %505 = vmatpush1.msra.mxu0 0.0
  %506 = vmatprep.subr.mxu0 0.0
  %507 = vmatpush1.msra.mxu0 0.0
  %508 = vmatprep.subr.mxu0 0.0
  %509 = vmatpush1.msra.mxu0 0.0
  %510 = vmatprep.subr.mxu0 0.0
  %511 = vmatpush1.msra.mxu0 0.0
  %512 = vmatprep.subr.mxu0 0.0
  %513 = vmatpush1.msra.mxu0 0.0
  %514 = vmatprep.subr.mxu0 0.0
  %515 = vmatpush1.msra.mxu0 0.0
  %516 = vmatprep.subr.mxu0 0.0
  %517 = vmatpush1.msra.mxu0 0.0
  %518 = vmatprep.subr.mxu0 0.0
  %519 = vmatpush1.msra.mxu0 0.0
  %520 = vmatprep.subr.mxu0 0.0
  %521 = vmatpush1.msra.mxu0 0.0
  %522 = vmatprep.subr.mxu0 0.0
  %523 = vmatpush1.msra.mxu0 0.0
  %524 = vmatprep.subr.mxu0 0.0
  %525 = vmatpush1.msra.mxu0 0.0
  %526 = vmatprep.subr.mxu0 0.0
  %527 = vmatpush1.msra.mxu0 0.0
  %528 = vmatprep.subr.mxu0 0.0
  %529 = vmatpush1.msra.mxu0 0.0
  %530 = vmatprep.subr.mxu0 0.0
  %531 = vmatpush1.msra.mxu0 0.0
  %532 = vmatprep.subr.mxu0 0.0
  %533 = vmatpush1.msra.mxu0 0.0
  %534 = vmatprep.subr.mxu0 0.0
  %535 = vmatpush1.msra.mxu0 0.0
  %536 = vmatprep.subr.mxu0 0.0
  %537 = vmatpush1.msra.mxu0 0.0
  %538 = vmatprep.subr.mxu0 0.0
  %539 = vmatpush1.msra.mxu0 0.0
  %540 = vmatprep.subr.mxu0 0.0
  %541 = vmatpush1.msra.mxu0 0.0
  %542 = vmatprep.subr.mxu0 0.0
  %543 = vmatpush1.msra.mxu0 0.0
  %544 = vmatprep.subr.mxu0 0.0
  %545 = vmatpush1.msra.mxu0 0.0
  %546 = vmatprep.subr.mxu0 0.0
  %547 = vmatpush1.msra.mxu0 0.0
  %548 = vmatprep.subr.mxu0 0.0
  %549 = vmatpush1.msra.mxu0 0.0
  %550 = vmatprep.subr.mxu0 0.0
  %551 = vmatpush1.msra.mxu0 0.0
  %552 = vmatprep.subr.mxu0 0.0
  %553 = vmatpush1.msra.mxu0 0.0
  %554 = vmatprep.subr.mxu0 0.0
  %555 = vmatpush1.msra.mxu0 0.0
  %556 = vmatprep.mubr.f32.mxu0 0.0
  %557 = vmatmul.mubr.f32.gmra.mrb[0].mxu0 %v490
  %v558 = vpop.f32.mrb[0].mxu0
  %v559 = vadd.f32 0.0, %v558
  %v560 = vpop.f32.mrb[0].mxu0
  %561 = vdwg.mxu0
  %v562 = vadd.f32 %v165, %v559
  %v563 = vxor.u32 %v562, 2147483648
  %v564 = vmul.f32 %v563, 1.442695
  %v565 = vpow.pop %v564
  %v566 = vadd.f32 %v565, 1.0
  %v567 = vrcp.pop %v566
  %v568 = vmul.f32 1.0, %v567
  %v569 = vtanh.pop %v562
  %v570 = vmul.f32 %v568, %v480
  %572 = vrot.lane.b32.xlu0 %v569, 64
  %v573 = vpop.permute.xlu0 %572
  %v575 = vmul.f32 %v568, %v573
  %577 = vrot.lane.b32.xlu0 %v575, 32
  %v578 = vpop.permute.xlu0 %577
  %v580 = vadd.f32 %v570, %v578
  %v581 = vtanh.pop %v580
  %583 = vrot.lane.b32.xlu0 %v581, 64
  %v584 = vpop.permute.xlu0 %583
  %v586 = vmul.f32 %v568, %v584
  %588 = vrot.lane.b32.xlu0 %v586, 32
  %v589 = vpop.permute.xlu0 %588
  %v590 = vsel %vm188, %v589, 0
  %592 = vmatprep.subr.mxu0 0.0
  %593 = vmatpush1.msra.mxu0 %v43
  %594 = vmatprep.subr.mxu0 0.0
  %595 = vmatpush1.msra.mxu0 %v44
  %596 = vmatprep.subr.mxu0 0.0
  %597 = vmatpush1.msra.mxu0 %v45
  %598 = vmatprep.subr.mxu0 0.0
  %599 = vmatpush1.msra.mxu0 %v46
  %600 = vmatprep.subr.mxu0 0.0
  %601 = vmatpush1.msra.mxu0 0.0
  %602 = vmatprep.subr.mxu0 0.0
  %603 = vmatpush1.msra.mxu0 0.0
  %604 = vmatprep.subr.mxu0 0.0
  %605 = vmatpush1.msra.mxu0 0.0
  %606 = vmatprep.subr.mxu0 0.0
  %607 = vmatpush1.msra.mxu0 0.0
  %608 = vmatprep.subr.mxu0 0.0
  %609 = vmatpush1.msra.mxu0 0.0
  %610 = vmatprep.subr.mxu0 0.0
  %611 = vmatpush1.msra.mxu0 0.0
  %612 = vmatprep.subr.mxu0 0.0
  %613 = vmatpush1.msra.mxu0 0.0
  %614 = vmatprep.subr.mxu0 0.0
  %615 = vmatpush1.msra.mxu0 0.0
  %616 = vmatprep.subr.mxu0 0.0
  %617 = vmatpush1.msra.mxu0 0.0
  %618 = vmatprep.subr.mxu0 0.0
  %619 = vmatpush1.msra.mxu0 0.0
  %620 = vmatprep.subr.mxu0 0.0
  %621 = vmatpush1.msra.mxu0 0.0
  %622 = vmatprep.subr.mxu0 0.0
  %623 = vmatpush1.msra.mxu0 0.0
  %624 = vmatprep.subr.mxu0 0.0
  %625 = vmatpush1.msra.mxu0 0.0
  %626 = vmatprep.subr.mxu0 0.0
  %627 = vmatpush1.msra.mxu0 0.0
  %628 = vmatprep.subr.mxu0 0.0
  %629 = vmatpush1.msra.mxu0 0.0
  %630 = vmatprep.subr.mxu0 0.0
  %631 = vmatpush1.msra.mxu0 0.0
  %632 = vmatprep.subr.mxu0 0.0
  %633 = vmatpush1.msra.mxu0 0.0
  %634 = vmatprep.subr.mxu0 0.0
  %635 = vmatpush1.msra.mxu0 0.0
  %636 = vmatprep.subr.mxu0 0.0
  %637 = vmatpush1.msra.mxu0 0.0
  %638 = vmatprep.subr.mxu0 0.0
  %639 = vmatpush1.msra.mxu0 0.0
  %640 = vmatprep.subr.mxu0 0.0
  %641 = vmatpush1.msra.mxu0 0.0
  %642 = vmatprep.subr.mxu0 0.0
  %643 = vmatpush1.msra.mxu0 0.0
  %644 = vmatprep.subr.mxu0 0.0
  %645 = vmatpush1.msra.mxu0 0.0
  %646 = vmatprep.subr.mxu0 0.0
  %647 = vmatpush1.msra.mxu0 0.0
  %648 = vmatprep.subr.mxu0 0.0
  %649 = vmatpush1.msra.mxu0 0.0
  %650 = vmatprep.subr.mxu0 0.0
  %651 = vmatpush1.msra.mxu0 0.0
  %652 = vmatprep.subr.mxu0 0.0
  %653 = vmatpush1.msra.mxu0 0.0
  %654 = vmatprep.subr.mxu0 0.0
  %655 = vmatpush1.msra.mxu0 0.0
  %656 = vmatprep.mubr.f32.mxu0 0.0
  %657 = vmatmul.mubr.f32.gmra.mrb[0].mxu0 %v590
  %v658 = vpop.f32.mrb[0].mxu0
  %v659 = vadd.f32 0.0, %v658
  %v660 = vpop.f32.mrb[0].mxu0
  %661 = vdwg.mxu0
  %v662 = vadd.f32 %v170, %v659
  %v663 = vxor.u32 %v662, 2147483648
  %v664 = vmul.f32 %v663, 1.442695
  %v665 = vpow.pop %v664
  %v666 = vadd.f32 %v665, 1.0
  %v667 = vrcp.pop %v666
  %v668 = vmul.f32 1.0, %v667
  %v669 = vtanh.pop %v662
  %v670 = vmul.f32 %v668, %v580
  %672 = vrot.lane.b32.xlu0 %v669, 64
  %v673 = vpop.permute.xlu0 %672
  %v675 = vmul.f32 %v668, %v673
  %677 = vrot.lane.b32.xlu0 %v675, 32
  %v678 = vpop.permute.xlu0 %677
  %v680 = vadd.f32 %v670, %v678
  %v681 = vtanh.pop %v680
  %683 = vrot.lane.b32.xlu0 %v681, 64
  %v684 = vpop.permute.xlu0 %683
  %v686 = vmul.f32 %v668, %v684
  %688 = vrot.lane.b32.xlu0 %v686, 32
  %v689 = vpop.permute.xlu0 %688
  %v690 = vsel %vm188, %v689, 0
  %692 = vmatprep.subr.mxu0 0.0
  %693 = vmatpush1.msra.mxu0 %v43
  %694 = vmatprep.subr.mxu0 0.0
  %695 = vmatpush1.msra.mxu0 %v44
  %696 = vmatprep.subr.mxu0 0.0
  %697 = vmatpush1.msra.mxu0 %v45
  %698 = vmatprep.subr.mxu0 0.0
  %699 = vmatpush1.msra.mxu0 %v46
  %700 = vmatprep.subr.mxu0 0.0
  %701 = vmatpush1.msra.mxu0 0.0
  %702 = vmatprep.subr.mxu0 0.0
  %703 = vmatpush1.msra.mxu0 0.0
  %704 = vmatprep.subr.mxu0 0.0
  %705 = vmatpush1.msra.mxu0 0.0
  %706 = vmatprep.subr.mxu0 0.0
  %707 = vmatpush1.msra.mxu0 0.0
  %708 = vmatprep.subr.mxu0 0.0
  %709 = vmatpush1.msra.mxu0 0.0
  %710 = vmatprep.subr.mxu0 0.0
  %711 = vmatpush1.msra.mxu0 0.0
  %712 = vmatprep.subr.mxu0 0.0
  %713 = vmatpush1.msra.mxu0 0.0
  %714 = vmatprep.subr.mxu0 0.0
  %715 = vmatpush1.msra.mxu0 0.0
  %716 = vmatprep.subr.mxu0 0.0
  %717 = vmatpush1.msra.mxu0 0.0
  %718 = vmatprep.subr.mxu0 0.0
  %719 = vmatpush1.msra.mxu0 0.0
  %720 = vmatprep.subr.mxu0 0.0
  %721 = vmatpush1.msra.mxu0 0.0
  %722 = vmatprep.subr.mxu0 0.0
  %723 = vmatpush1.msra.mxu0 0.0
  %724 = vmatprep.subr.mxu0 0.0
  %725 = vmatpush1.msra.mxu0 0.0
  %726 = vmatprep.subr.mxu0 0.0
  %727 = vmatpush1.msra.mxu0 0.0
  %728 = vmatprep.subr.mxu0 0.0
  %729 = vmatpush1.msra.mxu0 0.0
  %730 = vmatprep.subr.mxu0 0.0
  %731 = vmatpush1.msra.mxu0 0.0
  %732 = vmatprep.subr.mxu0 0.0
  %733 = vmatpush1.msra.mxu0 0.0
  %734 = vmatprep.subr.mxu0 0.0
  %735 = vmatpush1.msra.mxu0 0.0
  %736 = vmatprep.subr.mxu0 0.0
  %737 = vmatpush1.msra.mxu0 0.0
  %738 = vmatprep.subr.mxu0 0.0
  %739 = vmatpush1.msra.mxu0 0.0
  %740 = vmatprep.subr.mxu0 0.0
  %741 = vmatpush1.msra.mxu0 0.0
  %742 = vmatprep.subr.mxu0 0.0
  %743 = vmatpush1.msra.mxu0 0.0
  %744 = vmatprep.subr.mxu0 0.0
  %745 = vmatpush1.msra.mxu0 0.0
  %746 = vmatprep.subr.mxu0 0.0
  %747 = vmatpush1.msra.mxu0 0.0
  %748 = vmatprep.subr.mxu0 0.0
  %749 = vmatpush1.msra.mxu0 0.0
  %750 = vmatprep.subr.mxu0 0.0
  %751 = vmatpush1.msra.mxu0 0.0
  %752 = vmatprep.subr.mxu0 0.0
  %753 = vmatpush1.msra.mxu0 0.0
  %754 = vmatprep.subr.mxu0 0.0
  %755 = vmatpush1.msra.mxu0 0.0
  %756 = vmatprep.mubr.f32.mxu0 0.0
  %757 = vmatmul.mubr.f32.gmra.mrb[0].mxu0 %v690
  %v758 = vpop.f32.mrb[0].mxu0
  %v759 = vadd.f32 0.0, %v758
  %v760 = vpop.f32.mrb[0].mxu0
  %761 = vdwg.mxu0
  %v762 = vadd.f32 %v175, %v759
  %v763 = vxor.u32 %v762, 2147483648
  %v764 = vmul.f32 %v763, 1.442695
  %v765 = vpow.pop %v764
  %v766 = vadd.f32 %v765, 1.0
  %v767 = vrcp.pop %v766
  %v768 = vmul.f32 1.0, %v767
  %v769 = vtanh.pop %v762
  %v770 = vmul.f32 %v768, %v680
  %772 = vrot.lane.b32.xlu0 %v769, 64
  %v773 = vpop.permute.xlu0 %772
  %v775 = vmul.f32 %v768, %v773
  %777 = vrot.lane.b32.xlu0 %v775, 32
  %v778 = vpop.permute.xlu0 %777
  %v780 = vadd.f32 %v770, %v778
  %v781 = vtanh.pop %v780
  %783 = vrot.lane.b32.xlu0 %v781, 64
  %v784 = vpop.permute.xlu0 %783
  %v786 = vmul.f32 %v768, %v784
  %788 = vrot.lane.b32.xlu0 %v786, 32
  %v789 = vpop.permute.xlu0 %788
  %v790 = vsel %vm188, %v789, 0
  %792 = vmatprep.subr.mxu0 0.0
  %793 = vmatpush1.msra.mxu0 %v43
  %794 = vmatprep.subr.mxu0 0.0
  %795 = vmatpush1.msra.mxu0 %v44
  %796 = vmatprep.subr.mxu0 0.0
  %797 = vmatpush1.msra.mxu0 %v45
  %798 = vmatprep.subr.mxu0 0.0
  %799 = vmatpush1.msra.mxu0 %v46
  %800 = vmatprep.subr.mxu0 0.0
  %801 = vmatpush1.msra.mxu0 0.0
  %802 = vmatprep.subr.mxu0 0.0
  %803 = vmatpush1.msra.mxu0 0.0
  %804 = vmatprep.subr.mxu0 0.0
  %805 = vmatpush1.msra.mxu0 0.0
  %806 = vmatprep.subr.mxu0 0.0
  %807 = vmatpush1.msra.mxu0 0.0
  %808 = vmatprep.subr.mxu0 0.0
  %809 = vmatpush1.msra.mxu0 0.0
  %810 = vmatprep.subr.mxu0 0.0
  %811 = vmatpush1.msra.mxu0 0.0
  %812 = vmatprep.subr.mxu0 0.0
  %813 = vmatpush1.msra.mxu0 0.0
  %814 = vmatprep.subr.mxu0 0.0
  %815 = vmatpush1.msra.mxu0 0.0
  %816 = vmatprep.subr.mxu0 0.0
  %817 = vmatpush1.msra.mxu0 0.0
  %818 = vmatprep.subr.mxu0 0.0
  %819 = vmatpush1.msra.mxu0 0.0
  %820 = vmatprep.subr.mxu0 0.0
  %821 = vmatpush1.msra.mxu0 0.0
  %822 = vmatprep.subr.mxu0 0.0
  %823 = vmatpush1.msra.mxu0 0.0
  %824 = vmatprep.subr.mxu0 0.0
  %825 = vmatpush1.msra.mxu0 0.0
  %826 = vmatprep.subr.mxu0 0.0
  %827 = vmatpush1.msra.mxu0 0.0
  %828 = vmatprep.subr.mxu0 0.0
  %829 = vmatpush1.msra.mxu0 0.0
  %830 = vmatprep.subr.mxu0 0.0
  %831 = vmatpush1.msra.mxu0 0.0
  %832 = vmatprep.subr.mxu0 0.0
  %833 = vmatpush1.msra.mxu0 0.0
  %834 = vmatprep.subr.mxu0 0.0
  %835 = vmatpush1.msra.mxu0 0.0
  %836 = vmatprep.subr.mxu0 0.0
  %837 = vmatpush1.msra.mxu0 0.0
  %838 = vmatprep.subr.mxu0 0.0
  %839 = vmatpush1.msra.mxu0 0.0
  %840 = vmatprep.subr.mxu0 0.0
  %841 = vmatpush1.msra.mxu0 0.0
  %842 = vmatprep.subr.mxu0 0.0
  %843 = vmatpush1.msra.mxu0 0.0
  %844 = vmatprep.subr.mxu0 0.0
  %845 = vmatpush1.msra.mxu0 0.0
  %846 = vmatprep.subr.mxu0 0.0
  %847 = vmatpush1.msra.mxu0 0.0
  %848 = vmatprep.subr.mxu0 0.0
  %849 = vmatpush1.msra.mxu0 0.0
  %850 = vmatprep.subr.mxu0 0.0
  %851 = vmatpush1.msra.mxu0 0.0
  %852 = vmatprep.subr.mxu0 0.0
  %853 = vmatpush1.msra.mxu0 0.0
  %854 = vmatprep.subr.mxu0 0.0
  %855 = vmatpush1.msra.mxu0 0.0
  %856 = vmatprep.mubr.f32.mxu0 0.0
  %857 = vmatmul.mubr.f32.gmra.mrb[0].mxu0 %v790
  %v858 = vpop.f32.mrb[0].mxu0
  %v859 = vadd.f32 0.0, %v858
  %v860 = vpop.f32.mrb[0].mxu0
  %861 = vdwg.mxu0
  %v862 = vadd.f32 %v180, %v859
  %v863 = vxor.u32 %v862, 2147483648
  %v864 = vmul.f32 %v863, 1.442695
  %v865 = vpow.pop %v864
  %v866 = vadd.f32 %v865, 1.0
  %v867 = vrcp.pop %v866
  %v868 = vmul.f32 1.0, %v867
  %v869 = vtanh.pop %v862
  %v870 = vmul.f32 %v868, %v780
  %872 = vrot.lane.b32.xlu0 %v869, 64
  %v873 = vpop.permute.xlu0 %872
  %v875 = vmul.f32 %v868, %v873
  %877 = vrot.lane.b32.xlu0 %v875, 32
  %v878 = vpop.permute.xlu0 %877
  %v880 = vadd.f32 %v870, %v878
  %v881 = vtanh.pop %v880
  %883 = vrot.lane.b32.xlu0 %v881, 64
  %v884 = vpop.permute.xlu0 %883
  %v886 = vmul.f32 %v868, %v884
  %888 = vrot.lane.b32.xlu0 %v886, 32
  %v889 = vpop.permute.xlu0 %888
  %v890 = vsel %vm188, %v889, 0
  %892 = vmatprep.subr.mxu0 0.0
  %893 = vmatpush1.msra.mxu0 %v43
  %894 = vmatprep.subr.mxu0 0.0
  %895 = vmatpush1.msra.mxu0 %v44
  %896 = vmatprep.subr.mxu0 0.0
  %897 = vmatpush1.msra.mxu0 %v45
  %898 = vmatprep.subr.mxu0 0.0
  %899 = vmatpush1.msra.mxu0 %v46
  %900 = vmatprep.subr.mxu0 0.0
  %901 = vmatpush1.msra.mxu0 0.0
  %902 = vmatprep.subr.mxu0 0.0
  %903 = vmatpush1.msra.mxu0 0.0
  %904 = vmatprep.subr.mxu0 0.0
  %905 = vmatpush1.msra.mxu0 0.0
  %906 = vmatprep.subr.mxu0 0.0
  %907 = vmatpush1.msra.mxu0 0.0
  %908 = vmatprep.subr.mxu0 0.0
  %909 = vmatpush1.msra.mxu0 0.0
  %910 = vmatprep.subr.mxu0 0.0
  %911 = vmatpush1.msra.mxu0 0.0
  %912 = vmatprep.subr.mxu0 0.0
  %913 = vmatpush1.msra.mxu0 0.0
  %914 = vmatprep.subr.mxu0 0.0
  %915 = vmatpush1.msra.mxu0 0.0
  %916 = vmatprep.subr.mxu0 0.0
  %917 = vmatpush1.msra.mxu0 0.0
  %918 = vmatprep.subr.mxu0 0.0
  %919 = vmatpush1.msra.mxu0 0.0
  %920 = vmatprep.subr.mxu0 0.0
  %921 = vmatpush1.msra.mxu0 0.0
  %922 = vmatprep.subr.mxu0 0.0
  %923 = vmatpush1.msra.mxu0 0.0
  %924 = vmatprep.subr.mxu0 0.0
  %925 = vmatpush1.msra.mxu0 0.0
  %926 = vmatprep.subr.mxu0 0.0
  %927 = vmatpush1.msra.mxu0 0.0
  %928 = vmatprep.subr.mxu0 0.0
  %929 = vmatpush1.msra.mxu0 0.0
  %930 = vmatprep.subr.mxu0 0.0
  %931 = vmatpush1.msra.mxu0 0.0
  %932 = vmatprep.subr.mxu0 0.0
  %933 = vmatpush1.msra.mxu0 0.0
  %934 = vmatprep.subr.mxu0 0.0
  %935 = vmatpush1.msra.mxu0 0.0
  %936 = vmatprep.subr.mxu0 0.0
  %937 = vmatpush1.msra.mxu0 0.0
  %938 = vmatprep.subr.mxu0 0.0
  %939 = vmatpush1.msra.mxu0 0.0
  %940 = vmatprep.subr.mxu0 0.0
  %941 = vmatpush1.msra.mxu0 0.0
  %942 = vmatprep.subr.mxu0 0.0
  %943 = vmatpush1.msra.mxu0 0.0
  %944 = vmatprep.subr.mxu0 0.0
  %945 = vmatpush1.msra.mxu0 0.0
  %946 = vmatprep.subr.mxu0 0.0
  %947 = vmatpush1.msra.mxu0 0.0
  %948 = vmatprep.subr.mxu0 0.0
  %949 = vmatpush1.msra.mxu0 0.0
  %950 = vmatprep.subr.mxu0 0.0
  %951 = vmatpush1.msra.mxu0 0.0
  %952 = vmatprep.subr.mxu0 0.0
  %953 = vmatpush1.msra.mxu0 0.0
  %954 = vmatprep.subr.mxu0 0.0
  %955 = vmatpush1.msra.mxu0 0.0
  %956 = vmatprep.mubr.f32.mxu0 0.0
  %957 = vmatmul.mubr.f32.gmra.mrb[0].mxu0 %v890
  %v958 = vpop.f32.mrb[0].mxu0
  %v959 = vadd.f32 0.0, %v958
  %v960 = vpop.f32.mrb[0].mxu0
  %961 = vdwg.mxu0
  %v962 = vadd.f32 %v185, %v959
  %v963 = vxor.u32 %v962, 2147483648
  %v964 = vmul.f32 %v963, 1.442695
  %v965 = vpow.pop %v964
  %v966 = vadd.f32 %v965, 1.0
  %v967 = vrcp.pop %v966
  %v968 = vmul.f32 1.0, %v967
  %v969 = vtanh.pop %v962
  %v970 = vmul.f32 %v968, %v880
  %972 = vrot.lane.b32.xlu0 %v969, 64
  %v973 = vpop.permute.xlu0 %972
  %v975 = vmul.f32 %v968, %v973
  %977 = vrot.lane.b32.xlu0 %v975, 32
  %v978 = vpop.permute.xlu0 %977
  %v980 = vadd.f32 %v970, %v978
  %v981 = vtanh.pop %v980
  %983 = vrot.lane.b32.xlu0 %v981, 64
  %v984 = vpop.permute.xlu0 %983
  %v986 = vmul.f32 %v968, %v984
  %v987 = vld [vmem:[%s4] sm:$0xff]
  %v988 = vld [vmem:[%s4 + $0x8] sm:$0xff]
  %v989 = vld [vmem:[%s4 + $0x10] sm:$0xff]
  %v990 = vld [vmem:[%s4 + $0x18] sm:$0xff]
  %v991 = vld [vmem:[%s5] sm:$0xff]
  %v992 = vld [vmem:[%s5 + $0x8] sm:$0xff]
  %v993 = vld [vmem:[%s5 + $0x10] sm:$0xff]
  %v994 = vld [vmem:[%s5 + $0x18] sm:$0xff]
  %v995 = vld [vmem:[%s6] sm:$0x1]
  %v997 = vlaneseq
  %v998 = vshrl.u32 %v997, 7
  %v999 = vsub.s32 0, %v998
  %v1000 = vrot.slane %v995, %v999
  %1003 = vrot.lane.b32.xlu0 %v986, 32
  %v1004 = vpop.permute.xlu0 %1003
  %v1005 = vsel %vm188, %v1004, 0
  %1007 = vmatprep.subr.mxu0 0.0
  %1008 = vmatpush1.msra.mxu0 %v987
  %1009 = vmatprep.subr.mxu0 0.0
  %1010 = vmatpush1.msra.mxu0 %v988
  %1011 = vmatprep.subr.mxu0 0.0
  %1012 = vmatpush1.msra.mxu0 %v989
  %1013 = vmatprep.subr.mxu0 0.0
  %1014 = vmatpush1.msra.mxu0 %v990
  %1015 = vmatprep.subr.mxu0 0.0
  %1016 = vmatpush1.msra.mxu0 0.0
  %1017 = vmatprep.subr.mxu0 0.0
  %1018 = vmatpush1.msra.mxu0 0.0
  %1019 = vmatprep.subr.mxu0 0.0
  %1020 = vmatpush1.msra.mxu0 0.0
  %1021 = vmatprep.subr.mxu0 0.0
  %1022 = vmatpush1.msra.mxu0 0.0
  %1023 = vmatprep.subr.mxu0 0.0
  %1024 = vmatpush1.msra.mxu0 0.0
  %1025 = vmatprep.subr.mxu0 0.0
  %1026 = vmatpush1.msra.mxu0 0.0
  %1027 = vmatprep.subr.mxu0 0.0
  %1028 = vmatpush1.msra.mxu0 0.0
  %1029 = vmatprep.subr.mxu0 0.0
  %1030 = vmatpush1.msra.mxu0 0.0
  %1031 = vmatprep.subr.mxu0 0.0
  %1032 = vmatpush1.msra.mxu0 0.0
  %1033 = vmatprep.subr.mxu0 0.0
  %1034 = vmatpush1.msra.mxu0 0.0
  %1035 = vmatprep.subr.mxu0 0.0
  %1036 = vmatpush1.msra.mxu0 0.0
  %1037 = vmatprep.subr.mxu0 0.0
  %1038 = vmatpush1.msra.mxu0 0.0
  %1039 = vmatprep.subr.mxu0 0.0
  %1040 = vmatpush1.msra.mxu0 0.0
  %1041 = vmatprep.subr.mxu0 0.0
  %1042 = vmatpush1.msra.mxu0 0.0
  %1043 = vmatprep.subr.mxu0 0.0
  %1044 = vmatpush1.msra.mxu0 0.0
  %1045 = vmatprep.subr.mxu0 0.0
  %1046 = vmatpush1.msra.mxu0 0.0
  %1047 = vmatprep.subr.mxu0 0.0
  %1048 = vmatpush1.msra.mxu0 0.0
  %1049 = vmatprep.subr.mxu0 0.0
  %1050 = vmatpush1.msra.mxu0 0.0
  %1051 = vmatprep.subr.mxu0 0.0
  %1052 = vmatpush1.msra.mxu0 0.0
  %1053 = vmatprep.subr.mxu0 0.0
  %1054 = vmatpush1.msra.mxu0 0.0
  %1055 = vmatprep.subr.mxu0 0.0
  %1056 = vmatpush1.msra.mxu0 0.0
  %1057 = vmatprep.subr.mxu0 0.0
  %1058 = vmatpush1.msra.mxu0 0.0
  %1059 = vmatprep.subr.mxu0 0.0
  %1060 = vmatpush1.msra.mxu0 0.0
  %1061 = vmatprep.subr.mxu0 0.0
  %1062 = vmatpush1.msra.mxu0 0.0
  %1063 = vmatprep.subr.mxu0 0.0
  %1064 = vmatpush1.msra.mxu0 0.0
  %1065 = vmatprep.subr.mxu0 0.0
  %1066 = vmatpush1.msra.mxu0 0.0
  %1067 = vmatprep.subr.mxu0 0.0
  %1068 = vmatpush1.msra.mxu0 0.0
  %1069 = vmatprep.subr.mxu0 0.0
  %1070 = vmatpush1.msra.mxu0 0.0
  %1071 = vmatprep.mubr.f32.mxu0 0.0
  %1072 = vmatmul.mubr.f32.gmra.mrb[0].mxu0 %v290
  %v1073 = vpop.f32.mrb[0].mxu0
  %v1074 = vadd.f32 %v1000, %v1073
  %v1075 = vpop.f32.mrb[0].mxu0
  %1076 = vmatprep.mubr.f32.mxu0 0.0
  %1077 = vmatmul.mubr.f32.gmra.mrb[0].mxu0 %v390
  %v1078 = vpop.f32.mrb[0].mxu0
  %v1079 = vadd.f32 %v1000, %v1078
  %v1080 = vpop.f32.mrb[0].mxu0
  %1081 = vmatprep.mubr.f32.mxu0 0.0
  %1082 = vmatmul.mubr.f32.gmra.mrb[0].mxu0 %v490
  %v1083 = vpop.f32.mrb[0].mxu0
  %v1084 = vadd.f32 %v1000, %v1083
  %v1085 = vpop.f32.mrb[0].mxu0
  %1086 = vmatprep.mubr.f32.mxu0 0.0
  %1087 = vmatmul.mubr.f32.gmra.mrb[0].mxu0 %v590
  %v1088 = vpop.f32.mrb[0].mxu0
  %v1089 = vadd.f32 %v1000, %v1088
  %v1090 = vpop.f32.mrb[0].mxu0
  %1091 = vmatprep.mubr.f32.mxu0 0.0
  %1092 = vmatmul.mubr.f32.gmra.mrb[0].mxu0 %v690
  %v1093 = vpop.f32.mrb[0].mxu0
  %v1094 = vadd.f32 %v1000, %v1093
  %v1095 = vpop.f32.mrb[0].mxu0
  %1096 = vmatprep.mubr.f32.mxu0 0.0
  %1097 = vmatmul.mubr.f32.gmra.mrb[0].mxu0 %v790
  %v1098 = vpop.f32.mrb[0].mxu0
  %v1099 = vadd.f32 %v1000, %v1098
  %v1100 = vpop.f32.mrb[0].mxu0
  %1101 = vmatprep.mubr.f32.mxu0 0.0
  %1102 = vmatmul.mubr.f32.gmra.mrb[0].mxu0 %v890
  %v1103 = vpop.f32.mrb[0].mxu0
  %v1104 = vadd.f32 %v1000, %v1103
  %v1105 = vpop.f32.mrb[0].mxu0
  %1106 = vmatprep.mubr.f32.mxu0 0.0
  %1107 = vmatmul.mubr.f32.gmra.mrb[0].mxu0 %v1005
  %v1108 = vpop.f32.mrb[0].mxu0
  %v1109 = vadd.f32 %v1000, %v1108
  %v1110 = vpop.f32.mrb[0].mxu0
  %1111 = vdwg.mxu0
  %1112 = vmatprep.subr.mxu0 0.0
  %1113 = vmatpush1.msra.mxu0 %v991
  %1114 = vmatprep.subr.mxu0 0.0
  %1115 = vmatpush1.msra.mxu0 %v992
  %1116 = vmatprep.subr.mxu0 0.0
  %1117 = vmatpush1.msra.mxu0 %v993
  %1118 = vmatprep.subr.mxu0 0.0
  %1119 = vmatpush1.msra.mxu0 %v994
  %1120 = vmatprep.subr.mxu0 0.0
  %1121 = vmatpush1.msra.mxu0 0.0
  %1122 = vmatprep.subr.mxu0 0.0
  %1123 = vmatpush1.msra.mxu0 0.0
  %1124 = vmatprep.subr.mxu0 0.0
  %1125 = vmatpush1.msra.mxu0 0.0
  %1126 = vmatprep.subr.mxu0 0.0
  %1127 = vmatpush1.msra.mxu0 0.0
  %1128 = vmatprep.subr.mxu0 0.0
  %1129 = vmatpush1.msra.mxu0 0.0
  %1130 = vmatprep.subr.mxu0 0.0
  %1131 = vmatpush1.msra.mxu0 0.0
  %1132 = vmatprep.subr.mxu0 0.0
  %1133 = vmatpush1.msra.mxu0 0.0
  %1134 = vmatprep.subr.mxu0 0.0
  %1135 = vmatpush1.msra.mxu0 0.0
  %1136 = vmatprep.subr.mxu0 0.0
  %1137 = vmatpush1.msra.mxu0 0.0
  %1138 = vmatprep.subr.mxu0 0.0
  %1139 = vmatpush1.msra.mxu0 0.0
  %1140 = vmatprep.subr.mxu0 0.0
  %1141 = vmatpush1.msra.mxu0 0.0
  %1142 = vmatprep.subr.mxu0 0.0
  %1143 = vmatpush1.msra.mxu0 0.0
  %1144 = vmatprep.subr.mxu0 0.0
  %1145 = vmatpush1.msra.mxu0 0.0
  %1146 = vmatprep.subr.mxu0 0.0
  %1147 = vmatpush1.msra.mxu0 0.0
  %1148 = vmatprep.subr.mxu0 0.0
  %1149 = vmatpush1.msra.mxu0 0.0
  %1150 = vmatprep.subr.mxu0 0.0
  %1151 = vmatpush1.msra.mxu0 0.0
  %1152 = vmatprep.subr.mxu0 0.0
  %1153 = vmatpush1.msra.mxu0 0.0
  %1154 = vmatprep.subr.mxu0 0.0
  %1155 = vmatpush1.msra.mxu0 0.0
  %1156 = vmatprep.subr.mxu0 0.0
  %1157 = vmatpush1.msra.mxu0 0.0
  %1158 = vmatprep.subr.mxu0 0.0
  %1159 = vmatpush1.msra.mxu0 0.0
  %1160 = vmatprep.subr.mxu0 0.0
  %1161 = vmatpush1.msra.mxu0 0.0
  %1162 = vmatprep.subr.mxu0 0.0
  %1163 = vmatpush1.msra.mxu0 0.0
  %1164 = vmatprep.subr.mxu0 0.0
  %1165 = vmatpush1.msra.mxu0 0.0
  %1166 = vmatprep.subr.mxu0 0.0
  %1167 = vmatpush1.msra.mxu0 0.0
  %1168 = vmatprep.subr.mxu0 0.0
  %1169 = vmatpush1.msra.mxu0 0.0
  %1170 = vmatprep.subr.mxu0 0.0
  %1171 = vmatpush1.msra.mxu0 0.0
  %1172 = vmatprep.subr.mxu0 0.0
  %1173 = vmatpush1.msra.mxu0 0.0
  %1174 = vmatprep.subr.mxu0 0.0
  %1175 = vmatpush1.msra.mxu0 0.0
  %1176 = vmatprep.mubr.f32.mxu0 0.0
  %1177 = vmatmul.mubr.f32.gmra.mrb[0].mxu0 %v190
  %v1178 = vpop.f32.mrb[0].mxu0
  %v1179 = vadd.f32 0.0, %v1178
  %v1180 = vpop.f32.mrb[0].mxu0
  %1181 = vdwg.mxu0
  %v1182 = vadd.f32 %v1074, %v1179
  %v1183 = vxor.u32 %v1182, 2147483648
  %v1184 = vmul.f32 %v1183, 1.442695
  %v1185 = vpow.pop %v1184
  %v1186 = vadd.f32 %v1185, 1.0
  %v1187 = vrcp.pop %v1186
  %v1188 = vmul.f32 1.0, %v1187
  %v1189 = vtanh.pop %v1182
  %v1190 = vmul.f32 %v1188, 0.0
  %1192 = vrot.lane.b32.xlu0 %v1189, 64
  %v1193 = vpop.permute.xlu0 %1192
  %v1195 = vmul.f32 %v1188, %v1193
  %1197 = vrot.lane.b32.xlu0 %v1195, 32
  %v1198 = vpop.permute.xlu0 %1197
  %v1200 = vadd.f32 %v1190, %v1198
  %v1201 = vtanh.pop %v1200
  %1203 = vrot.lane.b32.xlu0 %v1201, 64
  %v1204 = vpop.permute.xlu0 %1203
  %v1206 = vmul.f32 %v1188, %v1204
  %1208 = vrot.lane.b32.xlu0 %v1206, 32
  %v1209 = vpop.permute.xlu0 %1208
  %v1210 = vsel %vm188, %v1209, 0
  %1212 = vmatprep.subr.mxu0 0.0
  %1213 = vmatpush1.msra.mxu0 %v991
  %1214 = vmatprep.subr.mxu0 0.0
  %1215 = vmatpush1.msra.mxu0 %v992
  %1216 = vmatprep.subr.mxu0 0.0
  %1217 = vmatpush1.msra.mxu0 %v993
  %1218 = vmatprep.subr.mxu0 0.0
  %1219 = vmatpush1.msra.mxu0 %v994
  %1220 = vmatprep.subr.mxu0 0.0
  %1221 = vmatpush1.msra.mxu0 0.0
  %1222 = vmatprep.subr.mxu0 0.0
  %1223 = vmatpush1.msra.mxu0 0.0
  %1224 = vmatprep.subr.mxu0 0.0
  %1225 = vmatpush1.msra.mxu0 0.0
  %1226 = vmatprep.subr.mxu0 0.0
  %1227 = vmatpush1.msra.mxu0 0.0
  %1228 = vmatprep.subr.mxu0 0.0
  %1229 = vmatpush1.msra.mxu0 0.0
  %1230 = vmatprep.subr.mxu0 0.0
  %1231 = vmatpush1.msra.mxu0 0.0
  %1232 = vmatprep.subr.mxu0 0.0
  %1233 = vmatpush1.msra.mxu0 0.0
  %1234 = vmatprep.subr.mxu0 0.0
  %1235 = vmatpush1.msra.mxu0 0.0
  %1236 = vmatprep.subr.mxu0 0.0
  %1237 = vmatpush1.msra.mxu0 0.0
  %1238 = vmatprep.subr.mxu0 0.0
  %1239 = vmatpush1.msra.mxu0 0.0
  %1240 = vmatprep.subr.mxu0 0.0
  %1241 = vmatpush1.msra.mxu0 0.0
  %1242 = vmatprep.subr.mxu0 0.0
  %1243 = vmatpush1.msra.mxu0 0.0
  %1244 = vmatprep.subr.mxu0 0.0
  %1245 = vmatpush1.msra.mxu0 0.0
  %1246 = vmatprep.subr.mxu0 0.0
  %1247 = vmatpush1.msra.mxu0 0.0
  %1248 = vmatprep.subr.mxu0 0.0
  %1249 = vmatpush1.msra.mxu0 0.0
  %1250 = vmatprep.subr.mxu0 0.0
  %1251 = vmatpush1.msra.mxu0 0.0
  %1252 = vmatprep.subr.mxu0 0.0
  %1253 = vmatpush1.msra.mxu0 0.0
  %1254 = vmatprep.subr.mxu0 0.0
  %1255 = vmatpush1.msra.mxu0 0.0
  %1256 = vmatprep.subr.mxu0 0.0
  %1257 = vmatpush1.msra.mxu0 0.0
  %1258 = vmatprep.subr.mxu0 0.0
  %1259 = vmatpush1.msra.mxu0 0.0
  %1260 = vmatprep.subr.mxu0 0.0
  %1261 = vmatpush1.msra.mxu0 0.0
  %1262 = vmatprep.subr.mxu0 0.0
  %1263 = vmatpush1.msra.mxu0 0.0
  %1264 = vmatprep.subr.mxu0 0.0
  %1265 = vmatpush1.msra.mxu0 0.0
  %1266 = vmatprep.subr.mxu0 0.0
  %1267 = vmatpush1.msra.mxu0 0.0
  %1268 = vmatprep.subr.mxu0 0.0
  %1269 = vmatpush1.msra.mxu0 0.0
  %1270 = vmatprep.subr.mxu0 0.0
  %1271 = vmatpush1.msra.mxu0 0.0
  %1272 = vmatprep.subr.mxu0 0.0
  %1273 = vmatpush1.msra.mxu0 0.0
  %1274 = vmatprep.subr.mxu0 0.0
  %1275 = vmatpush1.msra.mxu0 0.0
  %1276 = vmatprep.mubr.f32.mxu0 0.0
  %1277 = vmatmul.mubr.f32.gmra.mrb[0].mxu0 %v1210
  %v1278 = vpop.f32.mrb[0].mxu0
  %v1279 = vadd.f32 0.0, %v1278
  %v1280 = vpop.f32.mrb[0].mxu0
  %1281 = vdwg.mxu0
  %v1282 = vadd.f32 %v1079, %v1279
  %v1283 = vxor.u32 %v1282, 2147483648
  %v1284 = vmul.f32 %v1283, 1.442695
  %v1285 = vpow.pop %v1284
  %v1286 = vadd.f32 %v1285, 1.0
  %v1287 = vrcp.pop %v1286
  %v1288 = vmul.f32 1.0, %v1287
  %v1289 = vtanh.pop %v1282
  %v1290 = vmul.f32 %v1288, %v1200
  %1292 = vrot.lane.b32.xlu0 %v1289, 64
  %v1293 = vpop.permute.xlu0 %1292
  %v1295 = vmul.f32 %v1288, %v1293
  %1297 = vrot.lane.b32.xlu0 %v1295, 32
  %v1298 = vpop.permute.xlu0 %1297
  %v1300 = vadd.f32 %v1290, %v1298
  %v1301 = vtanh.pop %v1300
  %1303 = vrot.lane.b32.xlu0 %v1301, 64
  %v1304 = vpop.permute.xlu0 %1303
  %v1306 = vmul.f32 %v1288, %v1304
  %1308 = vrot.lane.b32.xlu0 %v1306, 32
  %v1309 = vpop.permute.xlu0 %1308
  %v1310 = vsel %vm188, %v1309, 0
  %1312 = vmatprep.subr.mxu0 0.0
  %1313 = vmatpush1.msra.mxu0 %v991
  %1314 = vmatprep.subr.mxu0 0.0
  %1315 = vmatpush1.msra.mxu0 %v992
  %1316 = vmatprep.subr.mxu0 0.0
  %1317 = vmatpush1.msra.mxu0 %v993
  %1318 = vmatprep.subr.mxu0 0.0
  %1319 = vmatpush1.msra.mxu0 %v994
  %1320 = vmatprep.subr.mxu0 0.0
  %1321 = vmatpush1.msra.mxu0 0.0
  %1322 = vmatprep.subr.mxu0 0.0
  %1323 = vmatpush1.msra.mxu0 0.0
  %1324 = vmatprep.subr.mxu0 0.0
  %1325 = vmatpush1.msra.mxu0 0.0
  %1326 = vmatprep.subr.mxu0 0.0
  %1327 = vmatpush1.msra.mxu0 0.0
  %1328 = vmatprep.subr.mxu0 0.0
  %1329 = vmatpush1.msra.mxu0 0.0
  %1330 = vmatprep.subr.mxu0 0.0
  %1331 = vmatpush1.msra.mxu0 0.0
  %1332 = vmatprep.subr.mxu0 0.0
  %1333 = vmatpush1.msra.mxu0 0.0
  %1334 = vmatprep.subr.mxu0 0.0
  %1335 = vmatpush1.msra.mxu0 0.0
  %1336 = vmatprep.subr.mxu0 0.0
  %1337 = vmatpush1.msra.mxu0 0.0
  %1338 = vmatprep.subr.mxu0 0.0
  %1339 = vmatpush1.msra.mxu0 0.0
  %1340 = vmatprep.subr.mxu0 0.0
  %1341 = vmatpush1.msra.mxu0 0.0
  %1342 = vmatprep.subr.mxu0 0.0
  %1343 = vmatpush1.msra.mxu0 0.0
  %1344 = vmatprep.subr.mxu0 0.0
  %1345 = vmatpush1.msra.mxu0 0.0
  %1346 = vmatprep.subr.mxu0 0.0
  %1347 = vmatpush1.msra.mxu0 0.0
  %1348 = vmatprep.subr.mxu0 0.0
  %1349 = vmatpush1.msra.mxu0 0.0
  %1350 = vmatprep.subr.mxu0 0.0
  %1351 = vmatpush1.msra.mxu0 0.0
  %1352 = vmatprep.subr.mxu0 0.0
  %1353 = vmatpush1.msra.mxu0 0.0
  %1354 = vmatprep.subr.mxu0 0.0
  %1355 = vmatpush1.msra.mxu0 0.0
  %1356 = vmatprep.subr.mxu0 0.0
  %1357 = vmatpush1.msra.mxu0 0.0
  %1358 = vmatprep.subr.mxu0 0.0
  %1359 = vmatpush1.msra.mxu0 0.0
  %1360 = vmatprep.subr.mxu0 0.0
  %1361 = vmatpush1.msra.mxu0 0.0
  %1362 = vmatprep.subr.mxu0 0.0
  %1363 = vmatpush1.msra.mxu0 0.0
  %1364 = vmatprep.subr.mxu0 0.0
  %1365 = vmatpush1.msra.mxu0 0.0
  %1366 = vmatprep.subr.mxu0 0.0
  %1367 = vmatpush1.msra.mxu0 0.0
  %1368 = vmatprep.subr.mxu0 0.0
  %1369 = vmatpush1.msra.mxu0 0.0
  %1370 = vmatprep.subr.mxu0 0.0
  %1371 = vmatpush1.msra.mxu0 0.0
  %1372 = vmatprep.subr.mxu0 0.0
  %1373 = vmatpush1.msra.mxu0 0.0
  %1374 = vmatprep.subr.mxu0 0.0
  %1375 = vmatpush1.msra.mxu0 0.0
  %1376 = vmatprep.mubr.f32.mxu0 0.0
  %1377 = vmatmul.mubr.f32.gmra.mrb[0].mxu0 %v1310
  %v1378 = vpop.f32.mrb[0].mxu0
  %v1379 = vadd.f32 0.0, %v1378
  %v1380 = vpop.f32.mrb[0].mxu0
  %1381 = vdwg.mxu0
  %v1382 = vadd.f32 %v1084, %v1379
  %v1383 = vxor.u32 %v1382, 2147483648
  %v1384 = vmul.f32 %v1383, 1.442695
  %v1385 = vpow.pop %v1384
  %v1386 = vadd.f32 %v1385, 1.0
  %v1387 = vrcp.pop %v1386
  %v1388 = vmul.f32 1.0, %v1387
  %v1389 = vtanh.pop %v1382
  %v1390 = vmul.f32 %v1388, %v1300
  %1392 = vrot.lane.b32.xlu0 %v1389, 64
  %v1393 = vpop.permute.xlu0 %1392
  %v1395 = vmul.f32 %v1388, %v1393
  %1397 = vrot.lane.b32.xlu0 %v1395, 32
  %v1398 = vpop.permute.xlu0 %1397
  %v1400 = vadd.f32 %v1390, %v1398
  %v1401 = vtanh.pop %v1400
  %1403 = vrot.lane.b32.xlu0 %v1401, 64
  %v1404 = vpop.permute.xlu0 %1403
  %v1406 = vmul.f32 %v1388, %v1404
  %1408 = vrot.lane.b32.xlu0 %v1406, 32
  %v1409 = vpop.permute.xlu0 %1408
  %v1410 = vsel %vm188, %v1409, 0
  %1412 = vmatprep.subr.mxu0 0.0
  %1413 = vmatpush1.msra.mxu0 %v991
  %1414 = vmatprep.subr.mxu0 0.0
  %1415 = vmatpush1.msra.mxu0 %v992
  %1416 = vmatprep.subr.mxu0 0.0
  %1417 = vmatpush1.msra.mxu0 %v993
  %1418 = vmatprep.subr.mxu0 0.0
  %1419 = vmatpush1.msra.mxu0 %v994
  %1420 = vmatprep.subr.mxu0 0.0
  %1421 = vmatpush1.msra.mxu0 0.0
  %1422 = vmatprep.subr.mxu0 0.0
  %1423 = vmatpush1.msra.mxu0 0.0
  %1424 = vmatprep.subr.mxu0 0.0
  %1425 = vmatpush1.msra.mxu0 0.0
  %1426 = vmatprep.subr.mxu0 0.0
  %1427 = vmatpush1.msra.mxu0 0.0
  %1428 = vmatprep.subr.mxu0 0.0
  %1429 = vmatpush1.msra.mxu0 0.0
  %1430 = vmatprep.subr.mxu0 0.0
  %1431 = vmatpush1.msra.mxu0 0.0
  %1432 = vmatprep.subr.mxu0 0.0
  %1433 = vmatpush1.msra.mxu0 0.0
  %1434 = vmatprep.subr.mxu0 0.0
  %1435 = vmatpush1.msra.mxu0 0.0
  %1436 = vmatprep.subr.mxu0 0.0
  %1437 = vmatpush1.msra.mxu0 0.0
  %1438 = vmatprep.subr.mxu0 0.0
  %1439 = vmatpush1.msra.mxu0 0.0
  %1440 = vmatprep.subr.mxu0 0.0
  %1441 = vmatpush1.msra.mxu0 0.0
  %1442 = vmatprep.subr.mxu0 0.0
  %1443 = vmatpush1.msra.mxu0 0.0
  %1444 = vmatprep.subr.mxu0 0.0
  %1445 = vmatpush1.msra.mxu0 0.0
  %1446 = vmatprep.subr.mxu0 0.0
  %1447 = vmatpush1.msra.mxu0 0.0
  %1448 = vmatprep.subr.mxu0 0.0
  %1449 = vmatpush1.msra.mxu0 0.0
  %1450 = vmatprep.subr.mxu0 0.0
  %1451 = vmatpush1.msra.mxu0 0.0
  %1452 = vmatprep.subr.mxu0 0.0
  %1453 = vmatpush1.msra.mxu0 0.0
  %1454 = vmatprep.subr.mxu0 0.0
  %1455 = vmatpush1.msra.mxu0 0.0
  %1456 = vmatprep.subr.mxu0 0.0
  %1457 = vmatpush1.msra.mxu0 0.0
  %1458 = vmatprep.subr.mxu0 0.0
  %1459 = vmatpush1.msra.mxu0 0.0
  %1460 = vmatprep.subr.mxu0 0.0
  %1461 = vmatpush1.msra.mxu0 0.0
  %1462 = vmatprep.subr.mxu0 0.0
  %1463 = vmatpush1.msra.mxu0 0.0
  %1464 = vmatprep.subr.mxu0 0.0
  %1465 = vmatpush1.msra.mxu0 0.0
  %1466 = vmatprep.subr.mxu0 0.0
  %1467 = vmatpush1.msra.mxu0 0.0
  %1468 = vmatprep.subr.mxu0 0.0
  %1469 = vmatpush1.msra.mxu0 0.0
  %1470 = vmatprep.subr.mxu0 0.0
  %1471 = vmatpush1.msra.mxu0 0.0
  %1472 = vmatprep.subr.mxu0 0.0
  %1473 = vmatpush1.msra.mxu0 0.0
  %1474 = vmatprep.subr.mxu0 0.0
  %1475 = vmatpush1.msra.mxu0 0.0
  %1476 = vmatprep.mubr.f32.mxu0 0.0
  %1477 = vmatmul.mubr.f32.gmra.mrb[0].mxu0 %v1410
  %v1478 = vpop.f32.mrb[0].mxu0
  %v1479 = vadd.f32 0.0, %v1478
  %v1480 = vpop.f32.mrb[0].mxu0
  %1481 = vdwg.mxu0
  %v1482 = vadd.f32 %v1089, %v1479
  %v1483 = vxor.u32 %v1482, 2147483648
  %v1484 = vmul.f32 %v1483, 1.442695
  %v1485 = vpow.pop %v1484
  %v1486 = vadd.f32 %v1485, 1.0
  %v1487 = vrcp.pop %v1486
  %v1488 = vmul.f32 1.0, %v1487
  %v1489 = vtanh.pop %v1482
  %v1490 = vmul.f32 %v1488, %v1400
  %1492 = vrot.lane.b32.xlu0 %v1489, 64
  %v1493 = vpop.permute.xlu0 %1492
  %v1495 = vmul.f32 %v1488, %v1493
  %1497 = vrot.lane.b32.xlu0 %v1495, 32
  %v1498 = vpop.permute.xlu0 %1497
  %v1500 = vadd.f32 %v1490, %v1498
  %v1501 = vtanh.pop %v1500
  %1503 = vrot.lane.b32.xlu0 %v1501, 64
  %v1504 = vpop.permute.xlu0 %1503
  %v1506 = vmul.f32 %v1488, %v1504
  %1508 = vrot.lane.b32.xlu0 %v1506, 32
  %v1509 = vpop.permute.xlu0 %1508
  %v1510 = vsel %vm188, %v1509, 0
  %1512 = vmatprep.subr.mxu0 0.0
  %1513 = vmatpush1.msra.mxu0 %v991
  %1514 = vmatprep.subr.mxu0 0.0
  %1515 = vmatpush1.msra.mxu0 %v992
  %1516 = vmatprep.subr.mxu0 0.0
  %1517 = vmatpush1.msra.mxu0 %v993
  %1518 = vmatprep.subr.mxu0 0.0
  %1519 = vmatpush1.msra.mxu0 %v994
  %1520 = vmatprep.subr.mxu0 0.0
  %1521 = vmatpush1.msra.mxu0 0.0
  %1522 = vmatprep.subr.mxu0 0.0
  %1523 = vmatpush1.msra.mxu0 0.0
  %1524 = vmatprep.subr.mxu0 0.0
  %1525 = vmatpush1.msra.mxu0 0.0
  %1526 = vmatprep.subr.mxu0 0.0
  %1527 = vmatpush1.msra.mxu0 0.0
  %1528 = vmatprep.subr.mxu0 0.0
  %1529 = vmatpush1.msra.mxu0 0.0
  %1530 = vmatprep.subr.mxu0 0.0
  %1531 = vmatpush1.msra.mxu0 0.0
  %1532 = vmatprep.subr.mxu0 0.0
  %1533 = vmatpush1.msra.mxu0 0.0
  %1534 = vmatprep.subr.mxu0 0.0
  %1535 = vmatpush1.msra.mxu0 0.0
  %1536 = vmatprep.subr.mxu0 0.0
  %1537 = vmatpush1.msra.mxu0 0.0
  %1538 = vmatprep.subr.mxu0 0.0
  %1539 = vmatpush1.msra.mxu0 0.0
  %1540 = vmatprep.subr.mxu0 0.0
  %1541 = vmatpush1.msra.mxu0 0.0
  %1542 = vmatprep.subr.mxu0 0.0
  %1543 = vmatpush1.msra.mxu0 0.0
  %1544 = vmatprep.subr.mxu0 0.0
  %1545 = vmatpush1.msra.mxu0 0.0
  %1546 = vmatprep.subr.mxu0 0.0
  %1547 = vmatpush1.msra.mxu0 0.0
  %1548 = vmatprep.subr.mxu0 0.0
  %1549 = vmatpush1.msra.mxu0 0.0
  %1550 = vmatprep.subr.mxu0 0.0
  %1551 = vmatpush1.msra.mxu0 0.0
  %1552 = vmatprep.subr.mxu0 0.0
  %1553 = vmatpush1.msra.mxu0 0.0
  %1554 = vmatprep.subr.mxu0 0.0
  %1555 = vmatpush1.msra.mxu0 0.0
  %1556 = vmatprep.subr.mxu0 0.0
  %1557 = vmatpush1.msra.mxu0 0.0
  %1558 = vmatprep.subr.mxu0 0.0
  %1559 = vmatpush1.msra.mxu0 0.0
  %1560 = vmatprep.subr.mxu0 0.0
  %1561 = vmatpush1.msra.mxu0 0.0
  %1562 = vmatprep.subr.mxu0 0.0
  %1563 = vmatpush1.msra.mxu0 0.0
  %1564 = vmatprep.subr.mxu0 0.0
  %1565 = vmatpush1.msra.mxu0 0.0
  %1566 = vmatprep.subr.mxu0 0.0
  %1567 = vmatpush1.msra.mxu0 0.0
  %1568 = vmatprep.subr.mxu0 0.0
  %1569 = vmatpush1.msra.mxu0 0.0
  %1570 = vmatprep.subr.mxu0 0.0
  %1571 = vmatpush1.msra.mxu0 0.0
  %1572 = vmatprep.subr.mxu0 0.0
  %1573 = vmatpush1.msra.mxu0 0.0
  %1574 = vmatprep.subr.mxu0 0.0
  %1575 = vmatpush1.msra.mxu0 0.0
  %1576 = vmatprep.mubr.f32.mxu0 0.0
  %1577 = vmatmul.mubr.f32.gmra.mrb[0].mxu0 %v1510
  %v1578 = vpop.f32.mrb[0].mxu0
  %v1579 = vadd.f32 0.0, %v1578
  %v1580 = vpop.f32.mrb[0].mxu0
  %1581 = vdwg.mxu0
  %v1582 = vadd.f32 %v1094, %v1579
  %v1583 = vxor.u32 %v1582, 2147483648
  %v1584 = vmul.f32 %v1583, 1.442695
  %v1585 = vpow.pop %v1584
  %v1586 = vadd.f32 %v1585, 1.0
  %v1587 = vrcp.pop %v1586
  %v1588 = vmul.f32 1.0, %v1587
  %v1589 = vtanh.pop %v1582
  %v1590 = vmul.f32 %v1588, %v1500
  %1592 = vrot.lane.b32.xlu0 %v1589, 64
  %v1593 = vpop.permute.xlu0 %1592
  %v1595 = vmul.f32 %v1588, %v1593
  %1597 = vrot.lane.b32.xlu0 %v1595, 32
  %v1598 = vpop.permute.xlu0 %1597
  %v1600 = vadd.f32 %v1590, %v1598
  %v1601 = vtanh.pop %v1600
  %1603 = vrot.lane.b32.xlu0 %v1601, 64
  %v1604 = vpop.permute.xlu0 %1603
  %v1606 = vmul.f32 %v1588, %v1604
  %1608 = vrot.lane.b32.xlu0 %v1606, 32
  %v1609 = vpop.permute.xlu0 %1608
  %v1610 = vsel %vm188, %v1609, 0
  %1612 = vmatprep.subr.mxu0 0.0
  %1613 = vmatpush1.msra.mxu0 %v991
  %1614 = vmatprep.subr.mxu0 0.0
  %1615 = vmatpush1.msra.mxu0 %v992
  %1616 = vmatprep.subr.mxu0 0.0
  %1617 = vmatpush1.msra.mxu0 %v993
  %1618 = vmatprep.subr.mxu0 0.0
  %1619 = vmatpush1.msra.mxu0 %v994
  %1620 = vmatprep.subr.mxu0 0.0
  %1621 = vmatpush1.msra.mxu0 0.0
  %1622 = vmatprep.subr.mxu0 0.0
  %1623 = vmatpush1.msra.mxu0 0.0
  %1624 = vmatprep.subr.mxu0 0.0
  %1625 = vmatpush1.msra.mxu0 0.0
  %1626 = vmatprep.subr.mxu0 0.0
  %1627 = vmatpush1.msra.mxu0 0.0
  %1628 = vmatprep.subr.mxu0 0.0
  %1629 = vmatpush1.msra.mxu0 0.0
  %1630 = vmatprep.subr.mxu0 0.0
  %1631 = vmatpush1.msra.mxu0 0.0
  %1632 = vmatprep.subr.mxu0 0.0
  %1633 = vmatpush1.msra.mxu0 0.0
  %1634 = vmatprep.subr.mxu0 0.0
  %1635 = vmatpush1.msra.mxu0 0.0
  %1636 = vmatprep.subr.mxu0 0.0
  %1637 = vmatpush1.msra.mxu0 0.0
  %1638 = vmatprep.subr.mxu0 0.0
  %1639 = vmatpush1.msra.mxu0 0.0
  %1640 = vmatprep.subr.mxu0 0.0
  %1641 = vmatpush1.msra.mxu0 0.0
  %1642 = vmatprep.subr.mxu0 0.0
  %1643 = vmatpush1.msra.mxu0 0.0
  %1644 = vmatprep.subr.mxu0 0.0
  %1645 = vmatpush1.msra.mxu0 0.0
  %1646 = vmatprep.subr.mxu0 0.0
  %1647 = vmatpush1.msra.mxu0 0.0
  %1648 = vmatprep.subr.mxu0 0.0
  %1649 = vmatpush1.msra.mxu0 0.0
  %1650 = vmatprep.subr.mxu0 0.0
  %1651 = vmatpush1.msra.mxu0 0.0
  %1652 = vmatprep.subr.mxu0 0.0
  %1653 = vmatpush1.msra.mxu0 0.0
  %1654 = vmatprep.subr.mxu0 0.0
  %1655 = vmatpush1.msra.mxu0 0.0
  %1656 = vmatprep.subr.mxu0 0.0
  %1657 = vmatpush1.msra.mxu0 0.0
  %1658 = vmatprep.subr.mxu0 0.0
  %1659 = vmatpush1.msra.mxu0 0.0
  %1660 = vmatprep.subr.mxu0 0.0
  %1661 = vmatpush1.msra.mxu0 0.0
  %1662 = vmatprep.subr.mxu0 0.0
  %1663 = vmatpush1.msra.mxu0 0.0
  %1664 = vmatprep.subr.mxu0 0.0
  %1665 = vmatpush1.msra.mxu0 0.0
  %1666 = vmatprep.subr.mxu0 0.0
  %1667 = vmatpush1.msra.mxu0 0.0
  %1668 = vmatprep.subr.mxu0 0.0
  %1669 = vmatpush1.msra.mxu0 0.0
  %1670 = vmatprep.subr.mxu0 0.0
  %1671 = vmatpush1.msra.mxu0 0.0
  %1672 = vmatprep.subr.mxu0 0.0
  %1673 = vmatpush1.msra.mxu0 0.0
  %1674 = vmatprep.subr.mxu0 0.0
  %1675 = vmatpush1.msra.mxu0 0.0
  %1676 = vmatprep.mubr.f32.mxu0 0.0
  %1677 = vmatmul.mubr.f32.gmra.mrb[0].mxu0 %v1610
  %v1678 = vpop.f32.mrb[0].mxu0
  %v1679 = vadd.f32 0.0, %v1678
  %v1680 = vpop.f32.mrb[0].mxu0
  %1681 = vdwg.mxu0
  %v1682 = vadd.f32 %v1099, %v1679
  %v1683 = vxor.u32 %v1682, 2147483648
  %v1684 = vmul.f32 %v1683, 1.442695
  %v1685 = vpow.pop %v1684
  %v1686 = vadd.f32 %v1685, 1.0
  %v1687 = vrcp.pop %v1686
  %v1688 = vmul.f32 1.0, %v1687
  %v1689 = vtanh.pop %v1682
  %v1690 = vmul.f32 %v1688, %v1600
  %1692 = vrot.lane.b32.xlu0 %v1689, 64
  %v1693 = vpop.permute.xlu0 %1692
  %v1695 = vmul.f32 %v1688, %v1693
  %1697 = vrot.lane.b32.xlu0 %v1695, 32
  %v1698 = vpop.permute.xlu0 %1697
  %v1700 = vadd.f32 %v1690, %v1698
  %v1701 = vtanh.pop %v1700
  %1703 = vrot.lane.b32.xlu0 %v1701, 64
  %v1704 = vpop.permute.xlu0 %1703
  %v1706 = vmul.f32 %v1688, %v1704
  %1708 = vrot.lane.b32.xlu0 %v1706, 32
  %v1709 = vpop.permute.xlu0 %1708
  %v1710 = vsel %vm188, %v1709, 0
  %1712 = vmatprep.subr.mxu0 0.0
  %1713 = vmatpush1.msra.mxu0 %v991
  %1714 = vmatprep.subr.mxu0 0.0
  %1715 = vmatpush1.msra.mxu0 %v992
  %1716 = vmatprep.subr.mxu0 0.0
  %1717 = vmatpush1.msra.mxu0 %v993
  %1718 = vmatprep.subr.mxu0 0.0
  %1719 = vmatpush1.msra.mxu0 %v994
  %1720 = vmatprep.subr.mxu0 0.0
  %1721 = vmatpush1.msra.mxu0 0.0
  %1722 = vmatprep.subr.mxu0 0.0
  %1723 = vmatpush1.msra.mxu0 0.0
  %1724 = vmatprep.subr.mxu0 0.0
  %1725 = vmatpush1.msra.mxu0 0.0
  %1726 = vmatprep.subr.mxu0 0.0
  %1727 = vmatpush1.msra.mxu0 0.0
  %1728 = vmatprep.subr.mxu0 0.0
  %1729 = vmatpush1.msra.mxu0 0.0
  %1730 = vmatprep.subr.mxu0 0.0
  %1731 = vmatpush1.msra.mxu0 0.0
  %1732 = vmatprep.subr.mxu0 0.0
  %1733 = vmatpush1.msra.mxu0 0.0
  %1734 = vmatprep.subr.mxu0 0.0
  %1735 = vmatpush1.msra.mxu0 0.0
  %1736 = vmatprep.subr.mxu0 0.0
  %1737 = vmatpush1.msra.mxu0 0.0
  %1738 = vmatprep.subr.mxu0 0.0
  %1739 = vmatpush1.msra.mxu0 0.0
  %1740 = vmatprep.subr.mxu0 0.0
  %1741 = vmatpush1.msra.mxu0 0.0
  %1742 = vmatprep.subr.mxu0 0.0
  %1743 = vmatpush1.msra.mxu0 0.0
  %1744 = vmatprep.subr.mxu0 0.0
  %1745 = vmatpush1.msra.mxu0 0.0
  %1746 = vmatprep.subr.mxu0 0.0
  %1747 = vmatpush1.msra.mxu0 0.0
  %1748 = vmatprep.subr.mxu0 0.0
  %1749 = vmatpush1.msra.mxu0 0.0
  %1750 = vmatprep.subr.mxu0 0.0
  %1751 = vmatpush1.msra.mxu0 0.0
  %1752 = vmatprep.subr.mxu0 0.0
  %1753 = vmatpush1.msra.mxu0 0.0
  %1754 = vmatprep.subr.mxu0 0.0
  %1755 = vmatpush1.msra.mxu0 0.0
  %1756 = vmatprep.subr.mxu0 0.0
  %1757 = vmatpush1.msra.mxu0 0.0
  %1758 = vmatprep.subr.mxu0 0.0
  %1759 = vmatpush1.msra.mxu0 0.0
  %1760 = vmatprep.subr.mxu0 0.0
  %1761 = vmatpush1.msra.mxu0 0.0
  %1762 = vmatprep.subr.mxu0 0.0
  %1763 = vmatpush1.msra.mxu0 0.0
  %1764 = vmatprep.subr.mxu0 0.0
  %1765 = vmatpush1.msra.mxu0 0.0
  %1766 = vmatprep.subr.mxu0 0.0
  %1767 = vmatpush1.msra.mxu0 0.0
  %1768 = vmatprep.subr.mxu0 0.0
  %1769 = vmatpush1.msra.mxu0 0.0
  %1770 = vmatprep.subr.mxu0 0.0
  %1771 = vmatpush1.msra.mxu0 0.0
  %1772 = vmatprep.subr.mxu0 0.0
  %1773 = vmatpush1.msra.mxu0 0.0
  %1774 = vmatprep.subr.mxu0 0.0
  %1775 = vmatpush1.msra.mxu0 0.0
  %1776 = vmatprep.mubr.f32.mxu0 0.0
  %1777 = vmatmul.mubr.f32.gmra.mrb[0].mxu0 %v1710
  %v1778 = vpop.f32.mrb[0].mxu0
  %v1779 = vadd.f32 0.0, %v1778
  %v1780 = vpop.f32.mrb[0].mxu0
  %1781 = vdwg.mxu0
  %v1782 = vadd.f32 %v1104, %v1779
  %v1783 = vxor.u32 %v1782, 2147483648
  %v1784 = vmul.f32 %v1783, 1.442695
  %v1785 = vpow.pop %v1784
  %v1786 = vadd.f32 %v1785, 1.0
  %v1787 = vrcp.pop %v1786
  %v1788 = vmul.f32 1.0, %v1787
  %v1789 = vtanh.pop %v1782
  %v1790 = vmul.f32 %v1788, %v1700
  %1792 = vrot.lane.b32.xlu0 %v1789, 64
  %v1793 = vpop.permute.xlu0 %1792
  %v1795 = vmul.f32 %v1788, %v1793
  %1797 = vrot.lane.b32.xlu0 %v1795, 32
  %v1798 = vpop.permute.xlu0 %1797
  %v1800 = vadd.f32 %v1790, %v1798
  %v1801 = vtanh.pop %v1800
  %1803 = vrot.lane.b32.xlu0 %v1801, 64
  %v1804 = vpop.permute.xlu0 %1803
  %v1806 = vmul.f32 %v1788, %v1804
  %1808 = vrot.lane.b32.xlu0 %v1806, 32
  %v1809 = vpop.permute.xlu0 %1808
  %v1810 = vsel %vm188, %v1809, 0
  %1812 = vmatprep.subr.mxu0 0.0
  %1813 = vmatpush1.msra.mxu0 %v991
  %1814 = vmatprep.subr.mxu0 0.0
  %1815 = vmatpush1.msra.mxu0 %v992
  %1816 = vmatprep.subr.mxu0 0.0
  %1817 = vmatpush1.msra.mxu0 %v993
  %1818 = vmatprep.subr.mxu0 0.0
  %1819 = vmatpush1.msra.mxu0 %v994
  %1820 = vmatprep.subr.mxu0 0.0
  %1821 = vmatpush1.msra.mxu0 0.0
  %1822 = vmatprep.subr.mxu0 0.0
  %1823 = vmatpush1.msra.mxu0 0.0
  %1824 = vmatprep.subr.mxu0 0.0
  %1825 = vmatpush1.msra.mxu0 0.0
  %1826 = vmatprep.subr.mxu0 0.0
  %1827 = vmatpush1.msra.mxu0 0.0
  %1828 = vmatprep.subr.mxu0 0.0
  %1829 = vmatpush1.msra.mxu0 0.0
  %1830 = vmatprep.subr.mxu0 0.0
  %1831 = vmatpush1.msra.mxu0 0.0
  %1832 = vmatprep.subr.mxu0 0.0
  %1833 = vmatpush1.msra.mxu0 0.0
  %1834 = vmatprep.subr.mxu0 0.0
  %1835 = vmatpush1.msra.mxu0 0.0
  %1836 = vmatprep.subr.mxu0 0.0
  %1837 = vmatpush1.msra.mxu0 0.0
  %1838 = vmatprep.subr.mxu0 0.0
  %1839 = vmatpush1.msra.mxu0 0.0
  %1840 = vmatprep.subr.mxu0 0.0
  %1841 = vmatpush1.msra.mxu0 0.0
  %1842 = vmatprep.subr.mxu0 0.0
  %1843 = vmatpush1.msra.mxu0 0.0
  %1844 = vmatprep.subr.mxu0 0.0
  %1845 = vmatpush1.msra.mxu0 0.0
  %1846 = vmatprep.subr.mxu0 0.0
  %1847 = vmatpush1.msra.mxu0 0.0
  %1848 = vmatprep.subr.mxu0 0.0
  %1849 = vmatpush1.msra.mxu0 0.0
  %1850 = vmatprep.subr.mxu0 0.0
  %1851 = vmatpush1.msra.mxu0 0.0
  %1852 = vmatprep.subr.mxu0 0.0
  %1853 = vmatpush1.msra.mxu0 0.0
  %1854 = vmatprep.subr.mxu0 0.0
  %1855 = vmatpush1.msra.mxu0 0.0
  %1856 = vmatprep.subr.mxu0 0.0
  %1857 = vmatpush1.msra.mxu0 0.0
  %1858 = vmatprep.subr.mxu0 0.0
  %1859 = vmatpush1.msra.mxu0 0.0
  %1860 = vmatprep.subr.mxu0 0.0
  %1861 = vmatpush1.msra.mxu0 0.0
  %1862 = vmatprep.subr.mxu0 0.0
  %1863 = vmatpush1.msra.mxu0 0.0
  %1864 = vmatprep.subr.mxu0 0.0
  %1865 = vmatpush1.msra.mxu0 0.0
  %1866 = vmatprep.subr.mxu0 0.0
  %1867 = vmatpush1.msra.mxu0 0.0
  %1868 = vmatprep.subr.mxu0 0.0
  %1869 = vmatpush1.msra.mxu0 0.0
  %1870 = vmatprep.subr.mxu0 0.0
  %1871 = vmatpush1.msra.mxu0 0.0
  %1872 = vmatprep.subr.mxu0 0.0
  %1873 = vmatpush1.msra.mxu0 0.0
  %1874 = vmatprep.subr.mxu0 0.0
  %1875 = vmatpush1.msra.mxu0 0.0
  %1876 = vmatprep.mubr.f32.mxu0 0.0
  %1877 = vmatmul.mubr.f32.gmra.mrb[0].mxu0 %v1810
  %v1878 = vpop.f32.mrb[0].mxu0
  %v1879 = vadd.f32 0.0, %v1878
  %v1880 = vpop.f32.mrb[0].mxu0
  %1881 = vdwg.mxu0
  %v1882 = vadd.f32 %v1109, %v1879
  %v1883 = vxor.u32 %v1882, 2147483648
  %v1884 = vmul.f32 %v1883, 1.442695
  %v1885 = vpow.pop %v1884
  %v1886 = vadd.f32 %v1885, 1.0
  %v1887 = vrcp.pop %v1886
  %v1888 = vmul.f32 1.0, %v1887
  %v1889 = vtanh.pop %v1882
  %v1890 = vmul.f32 %v1888, %v1800
  %1892 = vrot.lane.b32.xlu0 %v1889, 64
  %v1893 = vpop.permute.xlu0 %1892
  %v1895 = vmul.f32 %v1888, %v1893
  %1897 = vrot.lane.b32.xlu0 %v1895, 32
  %v1898 = vpop.permute.xlu0 %1897
  %v1900 = vadd.f32 %v1890, %v1898
  %v1901 = vtanh.pop %v1900
  %1903 = vrot.lane.b32.xlu0 %v1901, 64
  %v1904 = vpop.permute.xlu0 %1903
  %v1906 = vmul.f32 %v1888, %v1904
  %v1907 = vld [vmem:[%s7] sm:$0xff]
  %v1908 = vld [vmem:[%s7 + $0x8] sm:$0xff]
  %v1909 = vld [vmem:[%s7 + $0x10] sm:$0xff]
  %v1910 = vld [vmem:[%s7 + $0x18] sm:$0xff]
  %v1911 = vld [vmem:[#allocation2] sm:$0x1]
  %v1913 = vlaneseq
  %v1914 = vshrl.u32 %v1913, 7
  %v1915 = vsub.s32 0, %v1914
  %v1916 = vrot.slane %v1911, %v1915
  %1919 = vrot.lane.b32.xlu0 %v1906, 32
  %v1920 = vpop.permute.xlu0 %1919
  %v1921 = vsel %vm188, %v1920, 0
  %1923 = vmatprep.subr.mxu0 0.0
  %1924 = vmatpush1.msra.mxu0 %v1907
  %1925 = vmatprep.subr.mxu0 0.0
  %1926 = vmatpush1.msra.mxu0 %v1908
  %1927 = vmatprep.subr.mxu0 0.0
  %1928 = vmatpush1.msra.mxu0 %v1909
  %1929 = vmatprep.subr.mxu0 0.0
  %1930 = vmatpush1.msra.mxu0 %v1910
  %1931 = vmatprep.subr.mxu0 0.0
  %1932 = vmatpush1.msra.mxu0 0.0
  %1933 = vmatprep.subr.mxu0 0.0
  %1934 = vmatpush1.msra.mxu0 0.0
  %1935 = vmatprep.subr.mxu0 0.0
  %1936 = vmatpush1.msra.mxu0 0.0
  %1937 = vmatprep.subr.mxu0 0.0
  %1938 = vmatpush1.msra.mxu0 0.0
  %1939 = vmatprep.subr.mxu0 0.0
  %1940 = vmatpush1.msra.mxu0 0.0
  %1941 = vmatprep.subr.mxu0 0.0
  %1942 = vmatpush1.msra.mxu0 0.0
  %1943 = vmatprep.subr.mxu0 0.0
  %1944 = vmatpush1.msra.mxu0 0.0
  %1945 = vmatprep.subr.mxu0 0.0
  %1946 = vmatpush1.msra.mxu0 0.0
  %1947 = vmatprep.subr.mxu0 0.0
  %1948 = vmatpush1.msra.mxu0 0.0
  %1949 = vmatprep.subr.mxu0 0.0
  %1950 = vmatpush1.msra.mxu0 0.0
  %1951 = vmatprep.subr.mxu0 0.0
  %1952 = vmatpush1.msra.mxu0 0.0
  %1953 = vmatprep.subr.mxu0 0.0
  %1954 = vmatpush1.msra.mxu0 0.0
  %1955 = vmatprep.subr.mxu0 0.0
  %1956 = vmatpush1.msra.mxu0 0.0
  %1957 = vmatprep.subr.mxu0 0.0
  %1958 = vmatpush1.msra.mxu0 0.0
  %1959 = vmatprep.subr.mxu0 0.0
  %1960 = vmatpush1.msra.mxu0 0.0
  %1961 = vmatprep.subr.mxu0 0.0
  %1962 = vmatpush1.msra.mxu0 0.0
  %1963 = vmatprep.subr.mxu0 0.0
  %1964 = vmatpush1.msra.mxu0 0.0
  %1965 = vmatprep.subr.mxu0 0.0
  %1966 = vmatpush1.msra.mxu0 0.0
  %1967 = vmatprep.subr.mxu0 0.0
  %1968 = vmatpush1.msra.mxu0 0.0
  %1969 = vmatprep.subr.mxu0 0.0
  %1970 = vmatpush1.msra.mxu0 0.0
  %1971 = vmatprep.subr.mxu0 0.0
  %1972 = vmatpush1.msra.mxu0 0.0
  %1973 = vmatprep.subr.mxu0 0.0
  %1974 = vmatpush1.msra.mxu0 0.0
  %1975 = vmatprep.subr.mxu0 0.0
  %1976 = vmatpush1.msra.mxu0 0.0
  %1977 = vmatprep.subr.mxu0 0.0
  %1978 = vmatpush1.msra.mxu0 0.0
  %1979 = vmatprep.subr.mxu0 0.0
  %1980 = vmatpush1.msra.mxu0 0.0
  %1981 = vmatprep.subr.mxu0 0.0
  %1982 = vmatpush1.msra.mxu0 0.0
  %1983 = vmatprep.subr.mxu0 0.0
  %1984 = vmatpush1.msra.mxu0 0.0
  %1985 = vmatprep.subr.mxu0 0.0
  %1986 = vmatpush1.msra.mxu0 0.0
  %1987 = vmatprep.mubr.f32.mxu0 0.0
  %1988 = vmatmul.mubr.f32.gmra.mrb[0].mxu0 %v1921
  %v1989 = vpop.f32.mrb[0].mxu0
  %v1990 = vadd.f32 %v1916, %v1989
  %v1991 = vpop.f32.mrb[0].mxu0
  %1992 = vdwg.mxu0
  %vm1993 = vcmask 7168
  %1994 = vst.msk [vmem:[%s9] sm:$0xff] %vm1993, %v1990
  // Predicated region
  $region38: #{tpu_custom_call.1} parent=0 // pred_check
    _
  $region39: #{tpu_custom_call.1} parent=0 // pred_check_branch
    %1996 = sbr.rel (0) target = $region41
  $region40: #{tpu_custom_call.1} parent=0 // pred_region
    _
  $region41: #{tpu_custom_call.1} parent=0 // pred_fallthru
    _
  // Predicated region
  $region42: #{tpu_custom_call.1} parent=0 // pred_check
    _
  $region43: #{tpu_custom_call.1} parent=0 // pred_check_branch
    %1998 = sbr.rel (0) target = $region45
  $region44: #{tpu_custom_call.1} parent=0 // pred_region
    _
  $region45: #{tpu_custom_call.1} parent=0 // pred_fallthru
    _

</llo_original>
